<compile_context>
chip_gen: v5e
topology: v5e:2x2
jax: 0.10.0
libtpu: 0.0.40
codegen_flags: <defaults>
</compile_context>

<pallas_src>
import jax
import jax.numpy as jnp
from jax.experimental import pallas as pl
from jax.experimental.pallas import tpu as pltpu

IN_DIM = 468 * 3   # 1404 (kept unpadded; full-extent block along K)
H1 = 400
H2 = 100
OUT_DIM = 6

# 128-lane aligned padded output dims of each layer
H1_PAD = 512       # 4 * 128
H2_PAD = 128
OUT_PAD = 128


def _round_up(n, m):
    return ((n + m - 1) // m) * m


def facenet_kernel(x_ref, w1_ref, w2_ref, w3_ref, b_ref, o_ref):
    # f32 -> bf16 cast on the VPU (slack under the MXU); all dots accumulate in f32.
    x = x_ref[...].astype(jnp.bfloat16)
    # Layer 1 (K = 1404, MXU handles the unaligned contraction)
    h1 = jnp.dot(x, w1_ref[...], preferred_element_type=jnp.float32)
    h1 = jnp.maximum(h1 + b_ref[0:1, :], 0.0)
    # Layer 2
    h2 = jnp.dot(h1.astype(jnp.bfloat16), w2_ref[...],
                 preferred_element_type=jnp.float32)
    h2 = jnp.maximum(h2 + b_ref[1:2, :H2_PAD], 0.0)
    # Layer 3 (no activation); lane-dense 128-wide bf16 store, wrapper slices to 6.
    out = jnp.dot(h2.astype(jnp.bfloat16), w3_ref[...],
                  preferred_element_type=jnp.float32)
    o_ref[...] = (out + b_ref[2:3, :OUT_PAD]).astype(o_ref.dtype)


def init_params(key):
    """Unpadded f32 params mimicking nn.Linear default init, stored as (in, out)."""
    def linear(key, fan_in, fan_out):
        kw, kb = jax.random.split(key)
        bound = 1.0 / jnp.sqrt(fan_in)
        w = jax.random.uniform(kw, (fan_in, fan_out), jnp.float32, -bound, bound)
        b = jax.random.uniform(kb, (1, fan_out), jnp.float32, -bound, bound)
        return w, b

    k1, k2, k3 = jax.random.split(key, 3)
    w1, b1 = linear(k1, IN_DIM, H1)
    w2, b2 = linear(k2, H1, H2)
    w3, b3 = linear(k3, H2, OUT_DIM)
    return {"w1": w1, "b1": b1, "w2": w2, "b2": b2, "w3": w3, "b3": b3}


def prepare_params(p):
    """bf16 weights (MXU) with output dims zero-padded to 128-lane multiples; the three
    biases are packed into a single (3, H1_PAD) f32 buffer (one DMA instead of three).
    The K dim of w1 is left unpadded (1404) to match the unpadded x."""
    w1 = jnp.zeros((IN_DIM, H1_PAD), jnp.bfloat16).at[:, :H1].set(
        p["w1"].astype(jnp.bfloat16))
    w2 = jnp.zeros((H1_PAD, H2_PAD), jnp.bfloat16).at[:H1, :H2].set(
        p["w2"].astype(jnp.bfloat16))
    w3 = jnp.zeros((H2_PAD, OUT_PAD), jnp.bfloat16).at[:H2, :OUT_DIM].set(
        p["w3"].astype(jnp.bfloat16))
    b = jnp.zeros((3, H1_PAD), jnp.float32)
    b = b.at[0, :H1].set(p["b1"][0])
    b = b.at[1, :H2].set(p["b2"][0])
    b = b.at[2, :OUT_DIM].set(p["b3"][0])
    return (w1, w2, w3, b)


def _choose_tb(B):
    if B <= 8:
        return B                            # single full-extent block (legal: == array dim)
    tb = _round_up(pl.cdiv(B, 2), 8)        # >= 2 grid steps -> both v7x TCs get work
    return min(tb, 1024)                    # cap amortizes per-step overhead at large B


def facenet_forward(x, padded_params):
    """x: (B, 1404) float32, fed to the kernel unpadded and uncast."""
    B = x.shape[0]
    TB = _choose_tb(B)
    num_blocks = pl.cdiv(B, TB)

    # Triple-buffer the x DMA only when the pipeline is deep enough to use it.
    if num_blocks >= 4:
        x_spec = pl.BlockSpec((TB, IN_DIM), lambda i: (i, 0),
                              pipeline_mode=pl.Buffered(3))
    else:
        x_spec = pl.BlockSpec((TB, IN_DIM), lambda i: (i, 0))

    w1, w2, w3, b = padded_params

    flops = 2 * B * (IN_DIM * H1_PAD + H1_PAD * H2_PAD + H2_PAD * OUT_PAD)
    bytes_accessed = (x.size * 4                              # f32 x, unpadded
                      + (w1.size + w2.size + w3.size) * 2     # bf16 weights
                      + b.size * 4                            # f32 packed biases
                      + B * OUT_PAD * 2)                      # bf16 output

    out_padded = pl.pallas_call(
        facenet_kernel,
        out_shape=jax.ShapeDtypeStruct((B, OUT_PAD), jnp.bfloat16),
        grid_spec=pltpu.PrefetchScalarGridSpec(
            num_scalar_prefetch=0,
            grid=(num_blocks,),
            in_specs=[
                x_spec,                                              # x tile (f32, pipelined)
                pl.BlockSpec((IN_DIM, H1_PAD), lambda i: (0, 0)),    # w1 (VMEM-resident)
                pl.BlockSpec((H1_PAD, H2_PAD), lambda i: (0, 0)),    # w2
                pl.BlockSpec((H2_PAD, OUT_PAD), lambda i: (0, 0)),   # w3
                pl.BlockSpec((3, H1_PAD), lambda i: (0, 0)),         # packed biases
            ],
            out_specs=pl.BlockSpec((TB, OUT_PAD), lambda i: (i, 0)),
        ),
        compiler_params=pltpu.CompilerParams(
            dimension_semantics=("parallel",),
            vmem_limit_bytes=40 * 1024 * 1024,
        ),
        cost_estimate=pl.CostEstimate(
            flops=flops, transcendentals=0, bytes_accessed=bytes_accessed),
    )(x, w1, w2, w3, b)

    return out_padded[:B, :OUT_DIM].astype(jnp.float32)


def reference_forward(x, p):
    h1 = jnp.maximum(x @ p["w1"] + p["b1"], 0.0)
    h2 = jnp.maximum(h1 @ p["w2"] + p["b2"], 0.0)
    return h2 @ p["w3"] + p["b3"]


if __name__ == "__main__":
    key = jax.random.PRNGKey(0)
    kx, kp = jax.random.split(key)

    batch = 2
    x = jax.random.normal(kx, (batch, IN_DIM), jnp.float32)
    params = init_params(kp)
    padded_params = prepare_params(params)

    out = facenet_forward(x, padded_params)
    out = jax.block_until_ready(out)

    ref = reference_forward(x, params)  # f32 reference
    assert out.shape == (batch, OUT_DIM)
    # bf16 MXU operands / bf16 output with f32 accumulation -> loosened tolerance.
    assert jnp.allclose(out, ref, atol=5e-2, rtol=5e-2), (
        f"max abs err {jnp.max(jnp.abs(out - ref))}")

    print("KERNEL_OK")
</pallas_src>

<mosaic_0001>
module attributes {stable_mosaic.version = 11 : i64} {
  func.func @facenet_kernel(%arg0: i32, %arg1: memref<2x1404xf32, #tpu.memory_space<vmem>>, %arg2: memref<1404x512xbf16, #tpu.memory_space<vmem>>, %arg3: memref<512x128xbf16, #tpu.memory_space<vmem>>, %arg4: memref<128x128xbf16, #tpu.memory_space<vmem>>, %arg5: memref<3x512xf32, #tpu.memory_space<vmem>>, %arg6: memref<2x128xbf16, #tpu.memory_space<vmem>>) attributes {dimension_semantics = [#tpu.dimension_semantics<parallel>], iteration_bounds = array<i64: 1>, scalar_prefetch = 0 : i64, scratch_operands = 0 : i64, tpu.core_type = #tpu.core_type<tc>, window_params = [{transform_indices = @transform_0, window_bounds = array<i64: 2, 1404>}, {pipeline_mode = #tpu.pipeline_mode<synchronous>, transform_indices = @transform_1, window_bounds = array<i64: 1404, 512>}, {pipeline_mode = #tpu.pipeline_mode<synchronous>, transform_indices = @transform_2, window_bounds = array<i64: 512, 128>}, {pipeline_mode = #tpu.pipeline_mode<synchronous>, transform_indices = @transform_3, window_bounds = array<i64: 128, 128>}, {pipeline_mode = #tpu.pipeline_mode<synchronous>, transform_indices = @transform_4, window_bounds = array<i64: 3, 512>}, {transform_indices = @transform_5, window_bounds = array<i64: 2, 128>}]} {
    %c0 = arith.constant 0 : index
    %c0_0 = arith.constant 0 : index
    %0 = vector.load %arg1[%c0, %c0_0] : memref<2x1404xf32, #tpu.memory_space<vmem>>, vector<2x1404xf32>
    %1 = arith.truncf %0 : vector<2x1404xf32> to vector<2x1404xbf16>
    %c0_1 = arith.constant 0 : index
    %c0_2 = arith.constant 0 : index
    %2 = vector.load %arg2[%c0_1, %c0_2] : memref<1404x512xbf16, #tpu.memory_space<vmem>>, vector<1404x512xbf16>
    %cst = arith.constant dense<0.000000e+00> : vector<2x512xf32>
    %3 = tpu.matmul %1, %2, %cst {dimension_numbers = #tpu.dot_dimension_numbers<[1], [0], [0], [1], [0, 0, 1, 1], [], []>} : vector<2x1404xbf16>, vector<1404x512xbf16>, vector<2x512xf32> -> vector<2x512xf32>
    %c0_3 = arith.constant 0 : index
    %c0_4 = arith.constant 0 : index
    %4 = vector.load %arg5[%c0_3, %c0_4] : memref<3x512xf32, #tpu.memory_space<vmem>>, vector<1x512xf32>
    %5 = vector.broadcast %4 : vector<1x512xf32> to vector<2x512xf32>
    %6 = arith.addf %3, %5 : vector<2x512xf32>
    %cst_5 = arith.constant 0.000000e+00 : f32
    %7 = vector.broadcast %cst_5 : f32 to vector<2x512xf32>
    %8 = arith.maximumf %6, %7 : vector<2x512xf32>
    %9 = arith.truncf %8 : vector<2x512xf32> to vector<2x512xbf16>
    %c0_6 = arith.constant 0 : index
    %c0_7 = arith.constant 0 : index
    %10 = vector.load %arg3[%c0_6, %c0_7] : memref<512x128xbf16, #tpu.memory_space<vmem>>, vector<512x128xbf16>
    %cst_8 = arith.constant dense<0.000000e+00> : vector<2x128xf32>
    %11 = tpu.matmul %9, %10, %cst_8 {dimension_numbers = #tpu.dot_dimension_numbers<[1], [0], [0], [1], [0, 0, 1, 1], [], []>} : vector<2x512xbf16>, vector<512x128xbf16>, vector<2x128xf32> -> vector<2x128xf32>
    %c1 = arith.constant 1 : index
    %c0_9 = arith.constant 0 : index
    %12 = vector.load %arg5[%c1, %c0_9] : memref<3x512xf32, #tpu.memory_space<vmem>>, vector<1x128xf32>
    %13 = vector.broadcast %12 : vector<1x128xf32> to vector<2x128xf32>
    %14 = arith.addf %11, %13 : vector<2x128xf32>
    %cst_10 = arith.constant 0.000000e+00 : f32
    %15 = vector.broadcast %cst_10 : f32 to vector<2x128xf32>
    %16 = arith.maximumf %14, %15 : vector<2x128xf32>
    %17 = arith.truncf %16 : vector<2x128xf32> to vector<2x128xbf16>
    %c0_11 = arith.constant 0 : index
    %c0_12 = arith.constant 0 : index
    %18 = vector.load %arg4[%c0_11, %c0_12] : memref<128x128xbf16, #tpu.memory_space<vmem>>, vector<128x128xbf16>
    %cst_13 = arith.constant dense<0.000000e+00> : vector<2x128xf32>
    %19 = tpu.matmul %17, %18, %cst_13 {dimension_numbers = #tpu.dot_dimension_numbers<[1], [0], [0], [1], [0, 0, 1, 1], [], []>} : vector<2x128xbf16>, vector<128x128xbf16>, vector<2x128xf32> -> vector<2x128xf32>
    %c2 = arith.constant 2 : index
    %c0_14 = arith.constant 0 : index
    %20 = vector.load %arg5[%c2, %c0_14] : memref<3x512xf32, #tpu.memory_space<vmem>>, vector<1x128xf32>
    %21 = vector.broadcast %20 : vector<1x128xf32> to vector<2x128xf32>
    %22 = arith.addf %19, %21 : vector<2x128xf32>
    %23 = arith.truncf %22 : vector<2x128xf32> to vector<2x128xbf16>
    %c0_15 = arith.constant 0 : index
    %c0_16 = arith.constant 0 : index
    %24 = vector.load %arg6[%c0_15, %c0_16] : memref<2x128xbf16, #tpu.memory_space<vmem>>, vector<2x128xbf16>
    tpu.vector_store %arg6[%c0_15, %c0_16], %23 {strides = array<i32>} : memref<2x128xbf16, #tpu.memory_space<vmem>>, vector<2x128xbf16>,
    return
  }
  func.func @transform_0(%arg0: i32) -> (i32, i32) {
    %c0_i32 = arith.constant 0 : i32
    %c0_i32_0 = arith.constant 0 : i32
    return %arg0, %c0_i32 : i32, i32
  }
  func.func @transform_1(%arg0: i32) -> (i32, i32) {
    %c0_i32 = arith.constant 0 : i32
    %c0_i32_0 = arith.constant 0 : i32
    %c0_i32_1 = arith.constant 0 : i32
    return %c0_i32, %c0_i32_0 : i32, i32
  }
  func.func @transform_2(%arg0: i32) -> (i32, i32) {
    %c0_i32 = arith.constant 0 : i32
    %c0_i32_0 = arith.constant 0 : i32
    %c0_i32_1 = arith.constant 0 : i32
    return %c0_i32, %c0_i32_0 : i32, i32
  }
  func.func @transform_3(%arg0: i32) -> (i32, i32) {
    %c0_i32 = arith.constant 0 : i32
    %c0_i32_0 = arith.constant 0 : i32
    %c0_i32_1 = arith.constant 0 : i32
    return %c0_i32, %c0_i32_0 : i32, i32
  }
  func.func @transform_4(%arg0: i32) -> (i32, i32) {
    %c0_i32 = arith.constant 0 : i32
    %c0_i32_0 = arith.constant 0 : i32
    %c0_i32_1 = arith.constant 0 : i32
    return %c0_i32, %c0_i32_0 : i32, i32
  }
  func.func @transform_5(%arg0: i32) -> (i32, i32) {
    %c0_i32 = arith.constant 0 : i32
    %c0_i32_0 = arith.constant 0 : i32
    return %arg0, %c0_i32 : i32, i32
  }
}

</mosaic_0001>

<llo_original>
// kernel: tpu_custom_call.1
$region0: #{tpu_custom_call.1}
  #allocation0 [shape = 'u32[]', space=smem, size = 0x4, offset = 0x4, fixed_abs, tag = 'smem constant byte address 0x4 - core index']
  #allocation1 [shape = 'u32[72,128]{1,0:T(1,128)}', space=vmem, size = 0x9000, scoped, tag = 'internal scratch']
  %s0 = inlined_call_operand.hbm [shape: f32[2,1404], index: 0, kind: input, shape index: {}]
  %s1 = inlined_call_operand.hbm [shape: bf16[1404,512], index: 1, kind: input, shape index: {}]
  %s2 = inlined_call_operand.hbm [shape: bf16[512,128], index: 2, kind: input, shape index: {}]
  %s3 = inlined_call_operand.hbm [shape: bf16[128,128], index: 3, kind: input, shape index: {}]
  %s4 = inlined_call_operand.hbm [shape: f32[3,512], index: 4, kind: input, shape index: {}]
  %s5 = inlined_call_operand.hbm [shape: bf16[2,128], index: 5, kind: output, shape index: {}]
  %s6 = sld [smem:[#allocation0]]
  $region50: #{tpu_custom_call.1} parent=0
    _
  %s8 = ssub.s32 1, %s6
  %s9 = scalar_select 0, %s8, %s6
  $region1: #{tpu_custom_call.1} parent=0
    #allocation2 [shape = 'u8[11264]{0}', space=vmem, size = 0x2c00, scoped, tag = 'input window, operand 0, single buffered']
    #allocation3 [shape = 's32[1]{0}', space=sflag, size = 0x4, scoped, tag = 'scoped memory for tpu_custom_call.1']
    #allocation4 [shape = 's32[1]{0}', space=sflag, size = 0x4, scoped, tag = 'scoped memory for tpu_custom_call.1']
    #allocation5 [shape = 'u8[1441792]{0}', space=vmem, size = 0x160000, scoped, tag = 'input window, operand 1, single buffered']
    #allocation6 [shape = 's32[1]{0}', space=sflag, size = 0x4, scoped, tag = 'scoped memory for tpu_custom_call.1']
    #allocation7 [shape = 'u8[131072]{0}', space=vmem, size = 0x20000, scoped, tag = 'input window, operand 2, single buffered']
    #allocation8 [shape = 'u8[32768]{0}', space=vmem, size = 0x8000, scoped, tag = 'input window, operand 3, single buffered']
    #allocation9 [shape = 's32[1]{0}', space=sflag, size = 0x4, scoped, tag = 'scoped memory for tpu_custom_call.1']
    #allocation10 [shape = 'u8[8192]{0}', space=vmem, size = 0x2000, scoped, tag = 'input window, operand 4, single buffered']
    #allocation11 [shape = 'u8[512]{0}', space=vmem, size = 0x400, scoped, tag = 'output window, operand 0, single buffered']
    %10 = vsyncpa [#allocation3], 0
    %11 = vsyncpa [#allocation6], 0
    %12 = vsyncpa [#allocation9], 0
    %13 = vsyncpa [#allocation4], 0
    // Predicated region
    $region2: #{tpu_custom_call.1} parent=1 // pred_check
      _
    $region3: #{tpu_custom_call.1} parent=1 // pred_check_branch
      %15 = sbr.rel (0) target = $region5
    $region4: #{tpu_custom_call.1} parent=1 // pred_region
      %17 = vsyncadd [#allocation3], 0
      %s19 = sshll.u32 %s0, 4
      %s20 = int_to_ptr.hbm [resolvable:$true] %s19
      %s21 = sshll.u32 [#allocation2], 4
      %s22 = int_to_ptr.vmem [resolvable:$true] %s21
      %24 = dma.hbm_to_vmem [thread:$0]  %s20, 352, %s22, [#allocation3]
    $region5: #{tpu_custom_call.1} parent=1 // pred_fallthru
      _
    // Predicated region
    $region6: #{tpu_custom_call.1} parent=1 // pred_check
      _
    $region7: #{tpu_custom_call.1} parent=1 // pred_check_branch
      %26 = sbr.rel (0) target = $region9
    $region8: #{tpu_custom_call.1} parent=1 // pred_region
      %28 = vsyncadd [#allocation6], 0
      %s29 = sshll.u32 %s1, 4
      %s30 = int_to_ptr.hbm [resolvable:$true] %s29
      %s31 = sshll.u32 [#allocation5], 4
      %s32 = int_to_ptr.vmem [resolvable:$true] %s31
      %37 = dma.hbm_to_vmem [thread:$0]  %s30, 45056, %s32, [#allocation6], 256, 256, 16
    $region9: #{tpu_custom_call.1} parent=1 // pred_fallthru
      _
    // Predicated region
    $region10: #{tpu_custom_call.1} parent=1 // pred_check
      _
    $region11: #{tpu_custom_call.1} parent=1 // pred_check_branch
      %39 = sbr.rel (0) target = $region13
    $region12: #{tpu_custom_call.1} parent=1 // pred_region
      %41 = vsyncadd [#allocation6], 0
      %s42 = sshll.u32 %s2, 4
      %s43 = int_to_ptr.hbm [resolvable:$true] %s42
      %s44 = sshll.u32 [#allocation7], 4
      %s45 = int_to_ptr.vmem [resolvable:$true] %s44
      %50 = dma.hbm_to_vmem [thread:$0]  %s43, 4096, %s45, [#allocation6], 64, 64, 4
    $region13: #{tpu_custom_call.1} parent=1 // pred_fallthru
      _
    // Predicated region
    $region14: #{tpu_custom_call.1} parent=1 // pred_check
      _
    $region15: #{tpu_custom_call.1} parent=1 // pred_check_branch
      %52 = sbr.rel (0) target = $region17
    $region16: #{tpu_custom_call.1} parent=1 // pred_region
      %54 = vsyncadd [#allocation9], 0
      %s55 = sshll.u32 %s3, 4
      %s56 = int_to_ptr.hbm [resolvable:$true] %s55
      %s57 = sshll.u32 [#allocation8], 4
      %s58 = int_to_ptr.vmem [resolvable:$true] %s57
      %63 = dma.hbm_to_vmem [thread:$0]  %s56, 1024, %s58, [#allocation9], 64, 64, 4
    $region17: #{tpu_custom_call.1} parent=1 // pred_fallthru
      _
    // Predicated region
    $region18: #{tpu_custom_call.1} parent=1 // pred_check
      _
    $region19: #{tpu_custom_call.1} parent=1 // pred_check_branch
      %65 = sbr.rel (0) target = $region21
    $region20: #{tpu_custom_call.1} parent=1 // pred_region
      %67 = vsyncadd [#allocation9], 0
      %s69 = sshll.u32 %s4, 4
      %s70 = int_to_ptr.hbm [resolvable:$true] %s69
      %s71 = sshll.u32 [#allocation10], 4
      %s72 = int_to_ptr.vmem [resolvable:$true] %s71
      %74 = dma.hbm_to_vmem [thread:$0]  %s70, 256, %s72, [#allocation9]
    $region21: #{tpu_custom_call.1} parent=1 // pred_fallthru
      _
    // Predicated region
    $region22: #{tpu_custom_call.1} parent=1 // pred_check
      _
    $region23: #{tpu_custom_call.1} parent=1 // pred_check_branch
      %76 = sbr.rel (0) target = $region25
    $region24: #{tpu_custom_call.1} parent=1 // pred_region
      %78 = dma.done [#allocation3], 352
    $region25: #{tpu_custom_call.1} parent=1 // pred_fallthru
      _
    // Predicated region
    $region26: #{tpu_custom_call.1} parent=1 // pred_check
      _
    $region27: #{tpu_custom_call.1} parent=1 // pred_check_branch
      %80 = sbr.rel (0) target = $region29
    $region28: #{tpu_custom_call.1} parent=1 // pred_region
      %82 = dma.done [#allocation6], 45056
    $region29: #{tpu_custom_call.1} parent=1 // pred_fallthru
      _
    // Predicated region
    $region30: #{tpu_custom_call.1} parent=1 // pred_check
      _
    $region31: #{tpu_custom_call.1} parent=1 // pred_check_branch
      %84 = sbr.rel (0) target = $region33
    $region32: #{tpu_custom_call.1} parent=1 // pred_region
      %86 = dma.done [#allocation6], 4096
    $region33: #{tpu_custom_call.1} parent=1 // pred_fallthru
      _
    // Predicated region
    $region34: #{tpu_custom_call.1} parent=1 // pred_check
      _
    $region35: #{tpu_custom_call.1} parent=1 // pred_check_branch
      %88 = sbr.rel (0) target = $region37
    $region36: #{tpu_custom_call.1} parent=1 // pred_region
      %90 = dma.done [#allocation9], 1024
    $region37: #{tpu_custom_call.1} parent=1 // pred_fallthru
      _
    // Predicated region
    $region38: #{tpu_custom_call.1} parent=1 // pred_check
      _
    $region39: #{tpu_custom_call.1} parent=1 // pred_check_branch
      %92 = sbr.rel (0) target = $region41
    $region40: #{tpu_custom_call.1} parent=1 // pred_region
      %94 = dma.done [#allocation9], 256
    $region41: #{tpu_custom_call.1} parent=1 // pred_fallthru
      _
    %v95 = vld [vmem:[#allocation2] sm:$0xff]
    %v96 = vld [vmem:[#allocation2 + $0x8] sm:$0xff]
    %v97 = vld [vmem:[#allocation2 + $0x10] sm:$0x3f]
    %101 = vst [vmem:[#allocation1] ss:$4 sm:$0xff] %v95
    %s102 = scalar_lea.vmem [#allocation1], 32
    %103 = vst [vmem:[%s102] ss:$4 sm:$0xff] %v96
    %v104 = vld.sshfl [vmem:[#allocation1] sm:$0xff pattern:$0x73625140]
    %v105 = vld.sshfl [vmem:[#allocation1 + $0x8] sm:$0xff pattern:$0x73625140]
    %v106 = vld.sshfl [vmem:[#allocation1 + $0x10] sm:$0xff pattern:$0x73625140]
    %v107 = vld.sshfl [vmem:[#allocation1 + $0x18] sm:$0xff pattern:$0x73625140]
    %v108 = vld.sshfl [vmem:[#allocation1 + $0x20] sm:$0xff pattern:$0x73625140]
    %v109 = vld.sshfl [vmem:[#allocation1 + $0x28] sm:$0xff pattern:$0x73625140]
    %v110 = vld.sshfl [vmem:[#allocation1 + $0x30] sm:$0xff pattern:$0x73625140]
    %v111 = vld.sshfl [vmem:[#allocation1 + $0x38] sm:$0xff pattern:$0x73625140]
    %112 = vst [vmem:[#allocation1] ss:$4 sm:$0xff] %v97
    %v113 = vld.sshfl [vmem:[#allocation1] sm:$0xff pattern:$0x73625140]
    %v114 = vld.sshfl [vmem:[#allocation1 + $0x8] sm:$0xff pattern:$0x73625140]
    %v115 = vld.sshfl [vmem:[#allocation1 + $0x10] sm:$0xff pattern:$0x73625140]
    %v127 = vpack.c.bf16 %v104, %v104
    %v128 = vpack.c.bf16 %v105, %v105
    %v129 = vpack.c.bf16 %v106, %v106
    %v130 = vpack.c.bf16 %v107, %v107
    %v131 = vpack.c.bf16 %v108, %v108
    %v132 = vpack.c.bf16 %v109, %v109
    %v133 = vpack.c.bf16 %v110, %v110
    %v134 = vpack.c.bf16 %v111, %v111
    %v135 = vpack.c.bf16 %v113, %v113
    %v136 = vpack.c.bf16 %v114, %v114
    %v137 = vpack.c.bf16 %v115, %v115
    %v138 = vld [vmem:[#allocation5] sm:$0xff]
    %v139 = vld [vmem:[#allocation5 + $0x8] sm:$0xff]
    %v140 = vld [vmem:[#allocation5 + $0x10] sm:$0xff]
    %v141 = vld [vmem:[#allocation5 + $0x18] sm:$0xff]
    %v142 = vld [vmem:[#allocation5 + $0x20] sm:$0xff]
    %v143 = vld [vmem:[#allocation5 + $0x28] sm:$0xff]
    %v144 = vld [vmem:[#allocation5 + $0x30] sm:$0xff]
    %v145 = vld [vmem:[#allocation5 + $0x38] sm:$0xff]
    %v146 = vld [vmem:[#allocation5 + $0x40] sm:$0xff]
    %v147 = vld [vmem:[#allocation5 + $0x48] sm:$0xff]
    %v148 = vld [vmem:[#allocation5 + $0x50] sm:$0xff]
    %v149 = vld [vmem:[#allocation5 + $0x58] sm:$0xff]
    %v150 = vld [vmem:[#allocation5 + $0x60] sm:$0xff]
    %v151 = vld [vmem:[#allocation5 + $0x68] sm:$0xff]
    %v152 = vld [vmem:[#allocation5 + $0x70] sm:$0xff]
    %v153 = vld [vmem:[#allocation5 + $0x78] sm:$0xff]
    %v154 = vld [vmem:[#allocation5 + $0x80] sm:$0xff]
    %v155 = vld [vmem:[#allocation5 + $0x88] sm:$0xff]
    %v156 = vld [vmem:[#allocation5 + $0x90] sm:$0xff]
    %v157 = vld [vmem:[#allocation5 + $0x98] sm:$0xff]
    %v158 = vld [vmem:[#allocation5 + $0xa0] sm:$0xff]
    %v159 = vld [vmem:[#allocation5 + $0xa8] sm:$0xff]
    %v160 = vld [vmem:[#allocation5 + $0xb0] sm:$0xff]
    %v161 = vld [vmem:[#allocation5 + $0xb8] sm:$0xff]
    %v162 = vld [vmem:[#allocation5 + $0xc0] sm:$0xff]
    %v163 = vld [vmem:[#allocation5 + $0xc8] sm:$0xff]
    %v164 = vld [vmem:[#allocation5 + $0xd0] sm:$0xff]
    %v165 = vld [vmem:[#allocation5 + $0xd8] sm:$0xff]
    %v166 = vld [vmem:[#allocation5 + $0xe0] sm:$0xff]
    %v167 = vld [vmem:[#allocation5 + $0xe8] sm:$0xff]
    %v168 = vld [vmem:[#allocation5 + $0xf0] sm:$0xff]
    %v169 = vld [vmem:[#allocation5 + $0xf8] sm:$0xff]
    %v170 = vld [vmem:[#allocation5 + $0x100] sm:$0xff]
    %v171 = vld [vmem:[#allocation5 + $0x108] sm:$0xff]
    %v172 = vld [vmem:[#allocation5 + $0x110] sm:$0xff]
    %v173 = vld [vmem:[#allocation5 + $0x118] sm:$0xff]
    %v174 = vld [vmem:[#allocation5 + $0x120] sm:$0xff]
    %v175 = vld [vmem:[#allocation5 + $0x128] sm:$0xff]
    %v176 = vld [vmem:[#allocation5 + $0x130] sm:$0xff]
    %v177 = vld [vmem:[#allocation5 + $0x138] sm:$0xff]
    %v178 = vld [vmem:[#allocation5 + $0x140] sm:$0xff]
    %v179 = vld [vmem:[#allocation5 + $0x148] sm:$0xff]
    %v180 = vld [vmem:[#allocation5 + $0x150] sm:$0xff]
    %v181 = vld [vmem:[#allocation5 + $0x158] sm:$0xff]
    %v182 = vld [vmem:[#allocation5 + $0x160] sm:$0xff]
    %v183 = vld [vmem:[#allocation5 + $0x168] sm:$0xff]
    %v184 = vld [vmem:[#allocation5 + $0x170] sm:$0xff]
    %v185 = vld [vmem:[#allocation5 + $0x178] sm:$0xff]
    %v186 = vld [vmem:[#allocation5 + $0x180] sm:$0xff]
    %v187 = vld [vmem:[#allocation5 + $0x188] sm:$0xff]
    %v188 = vld [vmem:[#allocation5 + $0x190] sm:$0xff]
    %v189 = vld [vmem:[#allocation5 + $0x198] sm:$0xff]
    %v190 = vld [vmem:[#allocation5 + $0x1a0] sm:$0xff]
    %v191 = vld [vmem:[#allocation5 + $0x1a8] sm:$0xff]
    %v192 = vld [vmem:[#allocation5 + $0x1b0] sm:$0xff]
    %v193 = vld [vmem:[#allocation5 + $0x1b8] sm:$0xff]
    %v194 = vld [vmem:[#allocation5 + $0x1c0] sm:$0xff]
    %v195 = vld [vmem:[#allocation5 + $0x1c8] sm:$0xff]
    %v196 = vld [vmem:[#allocation5 + $0x1d0] sm:$0xff]
    %v197 = vld [vmem:[#allocation5 + $0x1d8] sm:$0xff]
    %v198 = vld [vmem:[#allocation5 + $0x1e0] sm:$0xff]
    %v199 = vld [vmem:[#allocation5 + $0x1e8] sm:$0xff]
    %v200 = vld [vmem:[#allocation5 + $0x1f0] sm:$0xff]
    %v201 = vld [vmem:[#allocation5 + $0x1f8] sm:$0xff]
    %v202 = vld [vmem:[#allocation5 + $0x200] sm:$0xff]
    %v203 = vld [vmem:[#allocation5 + $0x208] sm:$0xff]
    %v204 = vld [vmem:[#allocation5 + $0x210] sm:$0xff]
    %v205 = vld [vmem:[#allocation5 + $0x218] sm:$0xff]
    %v206 = vld [vmem:[#allocation5 + $0x220] sm:$0xff]
    %v207 = vld [vmem:[#allocation5 + $0x228] sm:$0xff]
    %v208 = vld [vmem:[#allocation5 + $0x230] sm:$0xff]
    %v209 = vld [vmem:[#allocation5 + $0x238] sm:$0xff]
    %v210 = vld [vmem:[#allocation5 + $0x240] sm:$0xff]
    %v211 = vld [vmem:[#allocation5 + $0x248] sm:$0xff]
    %v212 = vld [vmem:[#allocation5 + $0x250] sm:$0xff]
    %v213 = vld [vmem:[#allocation5 + $0x258] sm:$0xff]
    %v214 = vld [vmem:[#allocation5 + $0x260] sm:$0xff]
    %v215 = vld [vmem:[#allocation5 + $0x268] sm:$0xff]
    %v216 = vld [vmem:[#allocation5 + $0x270] sm:$0xff]
    %v217 = vld [vmem:[#allocation5 + $0x278] sm:$0xff]
    %v218 = vld [vmem:[#allocation5 + $0x280] sm:$0xff]
    %v219 = vld [vmem:[#allocation5 + $0x288] sm:$0xff]
    %v220 = vld [vmem:[#allocation5 + $0x290] sm:$0xff]
    %v221 = vld [vmem:[#allocation5 + $0x298] sm:$0xff]
    %v222 = vld [vmem:[#allocation5 + $0x2a0] sm:$0xff]
    %v223 = vld [vmem:[#allocation5 + $0x2a8] sm:$0xff]
    %v224 = vld [vmem:[#allocation5 + $0x2b0] sm:$0xff]
    %v225 = vld [vmem:[#allocation5 + $0x2b8] sm:$0xff]
    %v226 = vld [vmem:[#allocation5 + $0x2c0] sm:$0xff]
    %v227 = vld [vmem:[#allocation5 + $0x2c8] sm:$0xff]
    %v228 = vld [vmem:[#allocation5 + $0x2d0] sm:$0xff]
    %v229 = vld [vmem:[#allocation5 + $0x2d8] sm:$0xff]
    %v230 = vld [vmem:[#allocation5 + $0x2e0] sm:$0xff]
    %v231 = vld [vmem:[#allocation5 + $0x2e8] sm:$0xff]
    %v232 = vld [vmem:[#allocation5 + $0x2f0] sm:$0xff]
    %v233 = vld [vmem:[#allocation5 + $0x2f8] sm:$0xff]
    %v234 = vld [vmem:[#allocation5 + $0x300] sm:$0xff]
    %v235 = vld [vmem:[#allocation5 + $0x308] sm:$0xff]
    %v236 = vld [vmem:[#allocation5 + $0x310] sm:$0xff]
    %v237 = vld [vmem:[#allocation5 + $0x318] sm:$0xff]
    %v238 = vld [vmem:[#allocation5 + $0x320] sm:$0xff]
    %v239 = vld [vmem:[#allocation5 + $0x328] sm:$0xff]
    %v240 = vld [vmem:[#allocation5 + $0x330] sm:$0xff]
    %v241 = vld [vmem:[#allocation5 + $0x338] sm:$0xff]
    %v242 = vld [vmem:[#allocation5 + $0x340] sm:$0xff]
    %v243 = vld [vmem:[#allocation5 + $0x348] sm:$0xff]
    %v244 = vld [vmem:[#allocation5 + $0x350] sm:$0xff]
    %v245 = vld [vmem:[#allocation5 + $0x358] sm:$0xff]
    %v246 = vld [vmem:[#allocation5 + $0x360] sm:$0xff]
    %v247 = vld [vmem:[#allocation5 + $0x368] sm:$0xff]
    %v248 = vld [vmem:[#allocation5 + $0x370] sm:$0xff]
    %v249 = vld [vmem:[#allocation5 + $0x378] sm:$0xff]
    %v250 = vld [vmem:[#allocation5 + $0x380] sm:$0xff]
    %v251 = vld [vmem:[#allocation5 + $0x388] sm:$0xff]
    %v252 = vld [vmem:[#allocation5 + $0x390] sm:$0xff]
    %v253 = vld [vmem:[#allocation5 + $0x398] sm:$0xff]
    %v254 = vld [vmem:[#allocation5 + $0x3a0] sm:$0xff]
    %v255 = vld [vmem:[#allocation5 + $0x3a8] sm:$0xff]
    %v256 = vld [vmem:[#allocation5 + $0x3b0] sm:$0xff]
    %v257 = vld [vmem:[#allocation5 + $0x3b8] sm:$0xff]
    %v258 = vld [vmem:[#allocation5 + $0x3c0] sm:$0xff]
    %v259 = vld [vmem:[#allocation5 + $0x3c8] sm:$0xff]
    %v260 = vld [vmem:[#allocation5 + $0x3d0] sm:$0xff]
    %v261 = vld [vmem:[#allocation5 + $0x3d8] sm:$0xff]
    %v262 = vld [vmem:[#allocation5 + $0x3e0] sm:$0xff]
    %v263 = vld [vmem:[#allocation5 + $0x3e8] sm:$0xff]
    %v264 = vld [vmem:[#allocation5 + $0x3f0] sm:$0xff]
    %v265 = vld [vmem:[#allocation5 + $0x3f8] sm:$0xff]
    %v266 = vld [vmem:[#allocation5 + $0x400] sm:$0xff]
    %v267 = vld [vmem:[#allocation5 + $0x408] sm:$0xff]
    %v268 = vld [vmem:[#allocation5 + $0x410] sm:$0xff]
    %v269 = vld [vmem:[#allocation5 + $0x418] sm:$0xff]
    %v270 = vld [vmem:[#allocation5 + $0x420] sm:$0xff]
    %v271 = vld [vmem:[#allocation5 + $0x428] sm:$0xff]
    %v272 = vld [vmem:[#allocation5 + $0x430] sm:$0xff]
    %v273 = vld [vmem:[#allocation5 + $0x438] sm:$0xff]
    %v274 = vld [vmem:[#allocation5 + $0x440] sm:$0xff]
    %v275 = vld [vmem:[#allocation5 + $0x448] sm:$0xff]
    %v276 = vld [vmem:[#allocation5 + $0x450] sm:$0xff]
    %v277 = vld [vmem:[#allocation5 + $0x458] sm:$0xff]
    %v278 = vld [vmem:[#allocation5 + $0x460] sm:$0xff]
    %v279 = vld [vmem:[#allocation5 + $0x468] sm:$0xff]
    %v280 = vld [vmem:[#allocation5 + $0x470] sm:$0xff]
    %v281 = vld [vmem:[#allocation5 + $0x478] sm:$0xff]
    %v282 = vld [vmem:[#allocation5 + $0x480] sm:$0xff]
    %v283 = vld [vmem:[#allocation5 + $0x488] sm:$0xff]
    %v284 = vld [vmem:[#allocation5 + $0x490] sm:$0xff]
    %v285 = vld [vmem:[#allocation5 + $0x498] sm:$0xff]
    %v286 = vld [vmem:[#allocation5 + $0x4a0] sm:$0xff]
    %v287 = vld [vmem:[#allocation5 + $0x4a8] sm:$0xff]
    %v288 = vld [vmem:[#allocation5 + $0x4b0] sm:$0xff]
    %v289 = vld [vmem:[#allocation5 + $0x4b8] sm:$0xff]
    %v290 = vld [vmem:[#allocation5 + $0x4c0] sm:$0xff]
    %v291 = vld [vmem:[#allocation5 + $0x4c8] sm:$0xff]
    %v292 = vld [vmem:[#allocation5 + $0x4d0] sm:$0xff]
    %v293 = vld [vmem:[#allocation5 + $0x4d8] sm:$0xff]
    %v294 = vld [vmem:[#allocation5 + $0x4e0] sm:$0xff]
    %v295 = vld [vmem:[#allocation5 + $0x4e8] sm:$0xff]
    %v296 = vld [vmem:[#allocation5 + $0x4f0] sm:$0xff]
    %v297 = vld [vmem:[#allocation5 + $0x4f8] sm:$0xff]
    %v298 = vld [vmem:[#allocation5 + $0x500] sm:$0xff]
    %v299 = vld [vmem:[#allocation5 + $0x508] sm:$0xff]
    %v300 = vld [vmem:[#allocation5 + $0x510] sm:$0xff]
    %v301 = vld [vmem:[#allocation5 + $0x518] sm:$0xff]
    %v302 = vld [vmem:[#allocation5 + $0x520] sm:$0xff]
    %v303 = vld [vmem:[#allocation5 + $0x528] sm:$0xff]
    %v304 = vld [vmem:[#allocation5 + $0x530] sm:$0xff]
    %v305 = vld [vmem:[#allocation5 + $0x538] sm:$0xff]
    %v306 = vld [vmem:[#allocation5 + $0x540] sm:$0xff]
    %v307 = vld [vmem:[#allocation5 + $0x548] sm:$0xff]
    %v308 = vld [vmem:[#allocation5 + $0x550] sm:$0xff]
    %v309 = vld [vmem:[#allocation5 + $0x558] sm:$0xff]
    %v310 = vld [vmem:[#allocation5 + $0x560] sm:$0xff]
    %v311 = vld [vmem:[#allocation5 + $0x568] sm:$0xff]
    %v312 = vld [vmem:[#allocation5 + $0x570] sm:$0xff]
    %v313 = vld [vmem:[#allocation5 + $0x578] sm:$0xff]
    %v314 = vld [vmem:[#allocation5 + $0x580] sm:$0xff]
    %v315 = vld [vmem:[#allocation5 + $0x588] sm:$0xff]
    %v316 = vld [vmem:[#allocation5 + $0x590] sm:$0xff]
    %v317 = vld [vmem:[#allocation5 + $0x598] sm:$0xff]
    %v318 = vld [vmem:[#allocation5 + $0x5a0] sm:$0xff]
    %v319 = vld [vmem:[#allocation5 + $0x5a8] sm:$0xff]
    %v320 = vld [vmem:[#allocation5 + $0x5b0] sm:$0xff]
    %v321 = vld [vmem:[#allocation5 + $0x5b8] sm:$0xff]
    %v322 = vld [vmem:[#allocation5 + $0x5c0] sm:$0xff]
    %v323 = vld [vmem:[#allocation5 + $0x5c8] sm:$0xff]
    %v324 = vld [vmem:[#allocation5 + $0x5d0] sm:$0xff]
    %v325 = vld [vmem:[#allocation5 + $0x5d8] sm:$0xff]
    %v326 = vld [vmem:[#allocation5 + $0x5e0] sm:$0xff]
    %v327 = vld [vmem:[#allocation5 + $0x5e8] sm:$0xff]
    %v328 = vld [vmem:[#allocation5 + $0x5f0] sm:$0xff]
    %v329 = vld [vmem:[#allocation5 + $0x5f8] sm:$0xff]
    %v330 = vld [vmem:[#allocation5 + $0x600] sm:$0xff]
    %v331 = vld [vmem:[#allocation5 + $0x608] sm:$0xff]
    %v332 = vld [vmem:[#allocation5 + $0x610] sm:$0xff]
    %v333 = vld [vmem:[#allocation5 + $0x618] sm:$0xff]
    %v334 = vld [vmem:[#allocation5 + $0x620] sm:$0xff]
    %v335 = vld [vmem:[#allocation5 + $0x628] sm:$0xff]
    %v336 = vld [vmem:[#allocation5 + $0x630] sm:$0xff]
    %v337 = vld [vmem:[#allocation5 + $0x638] sm:$0xff]
    %v338 = vld [vmem:[#allocation5 + $0x640] sm:$0xff]
    %v339 = vld [vmem:[#allocation5 + $0x648] sm:$0xff]
    %v340 = vld [vmem:[#allocation5 + $0x650] sm:$0xff]
    %v341 = vld [vmem:[#allocation5 + $0x658] sm:$0xff]
    %v342 = vld [vmem:[#allocation5 + $0x660] sm:$0xff]
    %v343 = vld [vmem:[#allocation5 + $0x668] sm:$0xff]
    %v344 = vld [vmem:[#allocation5 + $0x670] sm:$0xff]
    %v345 = vld [vmem:[#allocation5 + $0x678] sm:$0xff]
    %v346 = vld [vmem:[#allocation5 + $0x680] sm:$0xff]
    %v347 = vld [vmem:[#allocation5 + $0x688] sm:$0xff]
    %v348 = vld [vmem:[#allocation5 + $0x690] sm:$0xff]
    %v349 = vld [vmem:[#allocation5 + $0x698] sm:$0xff]
    %v350 = vld [vmem:[#allocation5 + $0x6a0] sm:$0xff]
    %v351 = vld [vmem:[#allocation5 + $0x6a8] sm:$0xff]
    %v352 = vld [vmem:[#allocation5 + $0x6b0] sm:$0xff]
    %v353 = vld [vmem:[#allocation5 + $0x6b8] sm:$0xff]
    %v354 = vld [vmem:[#allocation5 + $0x6c0] sm:$0xff]
    %v355 = vld [vmem:[#allocation5 + $0x6c8] sm:$0xff]
    %v356 = vld [vmem:[#allocation5 + $0x6d0] sm:$0xff]
    %v357 = vld [vmem:[#allocation5 + $0x6d8] sm:$0xff]
    %v358 = vld [vmem:[#allocation5 + $0x6e0] sm:$0xff]
    %v359 = vld [vmem:[#allocation5 + $0x6e8] sm:$0xff]
    %v360 = vld [vmem:[#allocation5 + $0x6f0] sm:$0xff]
    %v361 = vld [vmem:[#allocation5 + $0x6f8] sm:$0xff]
    %v362 = vld [vmem:[#allocation5 + $0x700] sm:$0xff]
    %v363 = vld [vmem:[#allocation5 + $0x708] sm:$0xff]
    %v364 = vld [vmem:[#allocation5 + $0x710] sm:$0xff]
    %v365 = vld [vmem:[#allocation5 + $0x718] sm:$0xff]
    %v366 = vld [vmem:[#allocation5 + $0x720] sm:$0xff]
    %v367 = vld [vmem:[#allocation5 + $0x728] sm:$0xff]
    %v368 = vld [vmem:[#allocation5 + $0x730] sm:$0xff]
    %v369 = vld [vmem:[#allocation5 + $0x738] sm:$0xff]
    %v370 = vld [vmem:[#allocation5 + $0x740] sm:$0xff]
    %v371 = vld [vmem:[#allocation5 + $0x748] sm:$0xff]
    %v372 = vld [vmem:[#allocation5 + $0x750] sm:$0xff]
    %v373 = vld [vmem:[#allocation5 + $0x758] sm:$0xff]
    %v374 = vld [vmem:[#allocation5 + $0x760] sm:$0xff]
    %v375 = vld [vmem:[#allocation5 + $0x768] sm:$0xff]
    %v376 = vld [vmem:[#allocation5 + $0x770] sm:$0xff]
    %v377 = vld [vmem:[#allocation5 + $0x778] sm:$0xff]
    %v378 = vld [vmem:[#allocation5 + $0x780] sm:$0xff]
    %v379 = vld [vmem:[#allocation5 + $0x788] sm:$0xff]
    %v380 = vld [vmem:[#allocation5 + $0x790] sm:$0xff]
    %v381 = vld [vmem:[#allocation5 + $0x798] sm:$0xff]
    %v382 = vld [vmem:[#allocation5 + $0x7a0] sm:$0xff]
    %v383 = vld [vmem:[#allocation5 + $0x7a8] sm:$0xff]
    %v384 = vld [vmem:[#allocation5 + $0x7b0] sm:$0xff]
    %v385 = vld [vmem:[#allocation5 + $0x7b8] sm:$0xff]
    %v386 = vld [vmem:[#allocation5 + $0x7c0] sm:$0xff]
    %v387 = vld [vmem:[#allocation5 + $0x7c8] sm:$0xff]
    %v388 = vld [vmem:[#allocation5 + $0x7d0] sm:$0xff]
    %v389 = vld [vmem:[#allocation5 + $0x7d8] sm:$0xff]
    %v390 = vld [vmem:[#allocation5 + $0x7e0] sm:$0xff]
    %v391 = vld [vmem:[#allocation5 + $0x7e8] sm:$0xff]
    %v392 = vld [vmem:[#allocation5 + $0x7f0] sm:$0xff]
    %v393 = vld [vmem:[#allocation5 + $0x7f8] sm:$0xff]
    %v394 = vld [vmem:[#allocation5 + $0x800] sm:$0xff]
    %v395 = vld [vmem:[#allocation5 + $0x808] sm:$0xff]
    %v396 = vld [vmem:[#allocation5 + $0x810] sm:$0xff]
    %v397 = vld [vmem:[#allocation5 + $0x818] sm:$0xff]
    %v398 = vld [vmem:[#allocation5 + $0x820] sm:$0xff]
    %v399 = vld [vmem:[#allocation5 + $0x828] sm:$0xff]
    %v400 = vld [vmem:[#allocation5 + $0x830] sm:$0xff]
    %v401 = vld [vmem:[#allocation5 + $0x838] sm:$0xff]
    %v402 = vld [vmem:[#allocation5 + $0x840] sm:$0xff]
    %v403 = vld [vmem:[#allocation5 + $0x848] sm:$0xff]
    %v404 = vld [vmem:[#allocation5 + $0x850] sm:$0xff]
    %v405 = vld [vmem:[#allocation5 + $0x858] sm:$0xff]
    %v406 = vld [vmem:[#allocation5 + $0x860] sm:$0xff]
    %v407 = vld [vmem:[#allocation5 + $0x868] sm:$0xff]
    %v408 = vld [vmem:[#allocation5 + $0x870] sm:$0xff]
    %v409 = vld [vmem:[#allocation5 + $0x878] sm:$0xff]
    %v410 = vld [vmem:[#allocation5 + $0x880] sm:$0xff]
    %v411 = vld [vmem:[#allocation5 + $0x888] sm:$0xff]
    %v412 = vld [vmem:[#allocation5 + $0x890] sm:$0xff]
    %v413 = vld [vmem:[#allocation5 + $0x898] sm:$0xff]
    %v414 = vld [vmem:[#allocation5 + $0x8a0] sm:$0xff]
    %v415 = vld [vmem:[#allocation5 + $0x8a8] sm:$0xff]
    %v416 = vld [vmem:[#allocation5 + $0x8b0] sm:$0xff]
    %v417 = vld [vmem:[#allocation5 + $0x8b8] sm:$0xff]
    %v418 = vld [vmem:[#allocation5 + $0x8c0] sm:$0xff]
    %v419 = vld [vmem:[#allocation5 + $0x8c8] sm:$0xff]
    %v420 = vld [vmem:[#allocation5 + $0x8d0] sm:$0xff]
    %v421 = vld [vmem:[#allocation5 + $0x8d8] sm:$0xff]
    %v422 = vld [vmem:[#allocation5 + $0x8e0] sm:$0xff]
    %v423 = vld [vmem:[#allocation5 + $0x8e8] sm:$0xff]
    %v424 = vld [vmem:[#allocation5 + $0x8f0] sm:$0xff]
    %v425 = vld [vmem:[#allocation5 + $0x8f8] sm:$0xff]
    %v426 = vld [vmem:[#allocation5 + $0x900] sm:$0xff]
    %v427 = vld [vmem:[#allocation5 + $0x908] sm:$0xff]
    %v428 = vld [vmem:[#allocation5 + $0x910] sm:$0xff]
    %v429 = vld [vmem:[#allocation5 + $0x918] sm:$0xff]
    %v430 = vld [vmem:[#allocation5 + $0x920] sm:$0xff]
    %v431 = vld [vmem:[#allocation5 + $0x928] sm:$0xff]
    %v432 = vld [vmem:[#allocation5 + $0x930] sm:$0xff]
    %v433 = vld [vmem:[#allocation5 + $0x938] sm:$0xff]
    %v434 = vld [vmem:[#allocation5 + $0x940] sm:$0xff]
    %v435 = vld [vmem:[#allocation5 + $0x948] sm:$0xff]
    %v436 = vld [vmem:[#allocation5 + $0x950] sm:$0xff]
    %v437 = vld [vmem:[#allocation5 + $0x958] sm:$0xff]
    %v438 = vld [vmem:[#allocation5 + $0x960] sm:$0xff]
    %v439 = vld [vmem:[#allocation5 + $0x968] sm:$0xff]
    %v440 = vld [vmem:[#allocation5 + $0x970] sm:$0xff]
    %v441 = vld [vmem:[#allocation5 + $0x978] sm:$0xff]
    %v442 = vld [vmem:[#allocation5 + $0x980] sm:$0xff]
    %v443 = vld [vmem:[#allocation5 + $0x988] sm:$0xff]
    %v444 = vld [vmem:[#allocation5 + $0x990] sm:$0xff]
    %v445 = vld [vmem:[#allocation5 + $0x998] sm:$0xff]
    %v446 = vld [vmem:[#allocation5 + $0x9a0] sm:$0xff]
    %v447 = vld [vmem:[#allocation5 + $0x9a8] sm:$0xff]
    %v448 = vld [vmem:[#allocation5 + $0x9b0] sm:$0xff]
    %v449 = vld [vmem:[#allocation5 + $0x9b8] sm:$0xff]
    %v450 = vld [vmem:[#allocation5 + $0x9c0] sm:$0xff]
    %v451 = vld [vmem:[#allocation5 + $0x9c8] sm:$0xff]
    %v452 = vld [vmem:[#allocation5 + $0x9d0] sm:$0xff]
    %v453 = vld [vmem:[#allocation5 + $0x9d8] sm:$0xff]
    %v454 = vld [vmem:[#allocation5 + $0x9e0] sm:$0xff]
    %v455 = vld [vmem:[#allocation5 + $0x9e8] sm:$0xff]
    %v456 = vld [vmem:[#allocation5 + $0x9f0] sm:$0xff]
    %v457 = vld [vmem:[#allocation5 + $0x9f8] sm:$0xff]
    %v458 = vld [vmem:[#allocation5 + $0xa00] sm:$0xff]
    %v459 = vld [vmem:[#allocation5 + $0xa08] sm:$0xff]
    %v460 = vld [vmem:[#allocation5 + $0xa10] sm:$0xff]
    %v461 = vld [vmem:[#allocation5 + $0xa18] sm:$0xff]
    %v462 = vld [vmem:[#allocation5 + $0xa20] sm:$0xff]
    %v463 = vld [vmem:[#allocation5 + $0xa28] sm:$0xff]
    %v464 = vld [vmem:[#allocation5 + $0xa30] sm:$0xff]
    %v465 = vld [vmem:[#allocation5 + $0xa38] sm:$0xff]
    %v466 = vld [vmem:[#allocation5 + $0xa40] sm:$0xff]
    %v467 = vld [vmem:[#allocation5 + $0xa48] sm:$0xff]
    %v468 = vld [vmem:[#allocation5 + $0xa50] sm:$0xff]
    %v469 = vld [vmem:[#allocation5 + $0xa58] sm:$0xff]
    %v470 = vld [vmem:[#allocation5 + $0xa60] sm:$0xff]
    %v471 = vld [vmem:[#allocation5 + $0xa68] sm:$0xff]
    %v472 = vld [vmem:[#allocation5 + $0xa70] sm:$0xff]
    %v473 = vld [vmem:[#allocation5 + $0xa78] sm:$0xff]
    %v474 = vld [vmem:[#allocation5 + $0xa80] sm:$0xff]
    %v475 = vld [vmem:[#allocation5 + $0xa88] sm:$0xff]
    %v476 = vld [vmem:[#allocation5 + $0xa90] sm:$0xff]
    %v477 = vld [vmem:[#allocation5 + $0xa98] sm:$0xff]
    %v478 = vld [vmem:[#allocation5 + $0xaa0] sm:$0xff]
    %v479 = vld [vmem:[#allocation5 + $0xaa8] sm:$0xff]
    %v480 = vld [vmem:[#allocation5 + $0xab0] sm:$0xff]
    %v481 = vld [vmem:[#allocation5 + $0xab8] sm:$0xff]
    %v482 = vld [vmem:[#allocation5 + $0xac0] sm:$0xff]
    %v483 = vld [vmem:[#allocation5 + $0xac8] sm:$0xff]
    %v484 = vld [vmem:[#allocation5 + $0xad0] sm:$0xff]
    %v485 = vld [vmem:[#allocation5 + $0xad8] sm:$0xff]
    %v486 = vld [vmem:[#allocation5 + $0xae0] sm:$0xff]
    %v487 = vld [vmem:[#allocation5 + $0xae8] sm:$0xff]
    %v488 = vld [vmem:[#allocation5 + $0xaf0] sm:$0x33]
    %v489 = vld [vmem:[#allocation5 + $0xaf8] sm:$0x33]
    %v490 = vld [vmem:[#allocation10] ss:$4 sm:$0xf]
    %v492 = vperm.slane %v490, 0
    %v493 = vperm.slane %v490, 1
    %v494 = vperm.slane %v490, 2
    %v495 = vperm.slane %v490, 3
    %v852 = vunpack.c.l.b16 %v138
    %v853 = vunpack.c.h.b16 %v138
    %v854 = vunpack.c.l.b16 %v139
    %v855 = vunpack.c.h.b16 %v139
    %v856 = vunpack.c.l.b16 %v140
    %v857 = vunpack.c.h.b16 %v140
    %v858 = vunpack.c.l.b16 %v141
    %v859 = vunpack.c.h.b16 %v141
    %v860 = vunpack.c.l.b16 %v142
    %v861 = vunpack.c.h.b16 %v142
    %v862 = vunpack.c.l.b16 %v143
    %v863 = vunpack.c.h.b16 %v143
    %v864 = vunpack.c.l.b16 %v144
    %v865 = vunpack.c.h.b16 %v144
    %v866 = vunpack.c.l.b16 %v145
    %v867 = vunpack.c.h.b16 %v145
    %v868 = vunpack.c.l.b16 %v146
    %v869 = vunpack.c.h.b16 %v146
    %v870 = vunpack.c.l.b16 %v147
    %v871 = vunpack.c.h.b16 %v147
    %v872 = vunpack.c.l.b16 %v148
    %v873 = vunpack.c.h.b16 %v148
    %v874 = vunpack.c.l.b16 %v149
    %v875 = vunpack.c.h.b16 %v149
    %v876 = vunpack.c.l.b16 %v150
    %v877 = vunpack.c.h.b16 %v150
    %v878 = vunpack.c.l.b16 %v151
    %v879 = vunpack.c.h.b16 %v151
    %v880 = vunpack.c.l.b16 %v152
    %v881 = vunpack.c.h.b16 %v152
    %v882 = vunpack.c.l.b16 %v153
    %v883 = vunpack.c.h.b16 %v153
    %v884 = vunpack.c.l.b16 %v154
    %v885 = vunpack.c.h.b16 %v154
    %v886 = vunpack.c.l.b16 %v155
    %v887 = vunpack.c.h.b16 %v155
    %v888 = vunpack.c.l.b16 %v156
    %v889 = vunpack.c.h.b16 %v156
    %v890 = vunpack.c.l.b16 %v157
    %v891 = vunpack.c.h.b16 %v157
    %v892 = vunpack.c.l.b16 %v158
    %v893 = vunpack.c.h.b16 %v158
    %v894 = vunpack.c.l.b16 %v159
    %v895 = vunpack.c.h.b16 %v159
    %v896 = vunpack.c.l.b16 %v160
    %v897 = vunpack.c.h.b16 %v160
    %v898 = vunpack.c.l.b16 %v161
    %v899 = vunpack.c.h.b16 %v161
    %v900 = vunpack.c.l.b16 %v162
    %v901 = vunpack.c.h.b16 %v162
    %v902 = vunpack.c.l.b16 %v163
    %v903 = vunpack.c.h.b16 %v163
    %v904 = vunpack.c.l.b16 %v164
    %v905 = vunpack.c.h.b16 %v164
    %v906 = vunpack.c.l.b16 %v165
    %v907 = vunpack.c.h.b16 %v165
    %v908 = vunpack.c.l.b16 %v166
    %v909 = vunpack.c.h.b16 %v166
    %v910 = vunpack.c.l.b16 %v167
    %v911 = vunpack.c.h.b16 %v167
    %v912 = vunpack.c.l.b16 %v168
    %v913 = vunpack.c.h.b16 %v168
    %v914 = vunpack.c.l.b16 %v169
    %v915 = vunpack.c.h.b16 %v169
    %v916 = vunpack.c.l.b16 %v170
    %v917 = vunpack.c.h.b16 %v170
    %v918 = vunpack.c.l.b16 %v171
    %v919 = vunpack.c.h.b16 %v171
    %v920 = vunpack.c.l.b16 %v172
    %v921 = vunpack.c.h.b16 %v172
    %v922 = vunpack.c.l.b16 %v173
    %v923 = vunpack.c.h.b16 %v173
    %v924 = vunpack.c.l.b16 %v174
    %v925 = vunpack.c.h.b16 %v174
    %v926 = vunpack.c.l.b16 %v175
    %v927 = vunpack.c.h.b16 %v175
    %v928 = vunpack.c.l.b16 %v176
    %v929 = vunpack.c.h.b16 %v176
    %v930 = vunpack.c.l.b16 %v177
    %v931 = vunpack.c.h.b16 %v177
    %v932 = vunpack.c.l.b16 %v178
    %v933 = vunpack.c.h.b16 %v178
    %v934 = vunpack.c.l.b16 %v179
    %v935 = vunpack.c.h.b16 %v179
    %v936 = vunpack.c.l.b16 %v180
    %v937 = vunpack.c.h.b16 %v180
    %v938 = vunpack.c.l.b16 %v181
    %v939 = vunpack.c.h.b16 %v181
    %v940 = vunpack.c.l.b16 %v182
    %v941 = vunpack.c.h.b16 %v182
    %v942 = vunpack.c.l.b16 %v183
    %v943 = vunpack.c.h.b16 %v183
    %v944 = vunpack.c.l.b16 %v184
    %v945 = vunpack.c.h.b16 %v184
    %v946 = vunpack.c.l.b16 %v185
    %v947 = vunpack.c.h.b16 %v185
    %v948 = vunpack.c.l.b16 %v186
    %v949 = vunpack.c.h.b16 %v186
    %v950 = vunpack.c.l.b16 %v187
    %v951 = vunpack.c.h.b16 %v187
    %v952 = vunpack.c.l.b16 %v188
    %v953 = vunpack.c.h.b16 %v188
    %v954 = vunpack.c.l.b16 %v189
    %v955 = vunpack.c.h.b16 %v189
    %v956 = vunpack.c.l.b16 %v190
    %v957 = vunpack.c.h.b16 %v190
    %v958 = vunpack.c.l.b16 %v191
    %v959 = vunpack.c.h.b16 %v191
    %v960 = vunpack.c.l.b16 %v192
    %v961 = vunpack.c.h.b16 %v192
    %v962 = vunpack.c.l.b16 %v193
    %v963 = vunpack.c.h.b16 %v193
    %v964 = vunpack.c.l.b16 %v194
    %v965 = vunpack.c.h.b16 %v194
    %v966 = vunpack.c.l.b16 %v195
    %v967 = vunpack.c.h.b16 %v195
    %v968 = vunpack.c.l.b16 %v196
    %v969 = vunpack.c.h.b16 %v196
    %v970 = vunpack.c.l.b16 %v197
    %v971 = vunpack.c.h.b16 %v197
    %v972 = vunpack.c.l.b16 %v198
    %v973 = vunpack.c.h.b16 %v198
    %v974 = vunpack.c.l.b16 %v199
    %v975 = vunpack.c.h.b16 %v199
    %v976 = vunpack.c.l.b16 %v200
    %v977 = vunpack.c.h.b16 %v200
    %v978 = vunpack.c.l.b16 %v201
    %v979 = vunpack.c.h.b16 %v201
    %v980 = vunpack.c.l.b16 %v202
    %v981 = vunpack.c.h.b16 %v202
    %v982 = vunpack.c.l.b16 %v203
    %v983 = vunpack.c.h.b16 %v203
    %v984 = vunpack.c.l.b16 %v204
    %v985 = vunpack.c.h.b16 %v204
    %v986 = vunpack.c.l.b16 %v205
    %v987 = vunpack.c.h.b16 %v205
    %v988 = vunpack.c.l.b16 %v206
    %v989 = vunpack.c.h.b16 %v206
    %v990 = vunpack.c.l.b16 %v207
    %v991 = vunpack.c.h.b16 %v207
    %v992 = vunpack.c.l.b16 %v208
    %v993 = vunpack.c.h.b16 %v208
    %v994 = vunpack.c.l.b16 %v209
    %v995 = vunpack.c.h.b16 %v209
    %v996 = vunpack.c.l.b16 %v210
    %v997 = vunpack.c.h.b16 %v210
    %v998 = vunpack.c.l.b16 %v211
    %v999 = vunpack.c.h.b16 %v211
    %v1000 = vunpack.c.l.b16 %v212
    %v1001 = vunpack.c.h.b16 %v212
    %v1002 = vunpack.c.l.b16 %v213
    %v1003 = vunpack.c.h.b16 %v213
    %v1004 = vunpack.c.l.b16 %v214
    %v1005 = vunpack.c.h.b16 %v214
    %v1006 = vunpack.c.l.b16 %v215
    %v1007 = vunpack.c.h.b16 %v215
    %v1008 = vunpack.c.l.b16 %v216
    %v1009 = vunpack.c.h.b16 %v216
    %v1010 = vunpack.c.l.b16 %v217
    %v1011 = vunpack.c.h.b16 %v217
    %v1012 = vunpack.c.l.b16 %v218
    %v1013 = vunpack.c.h.b16 %v218
    %v1014 = vunpack.c.l.b16 %v219
    %v1015 = vunpack.c.h.b16 %v219
    %v1016 = vunpack.c.l.b16 %v220
    %v1017 = vunpack.c.h.b16 %v220
    %v1018 = vunpack.c.l.b16 %v221
    %v1019 = vunpack.c.h.b16 %v221
    %v1020 = vunpack.c.l.b16 %v222
    %v1021 = vunpack.c.h.b16 %v222
    %v1022 = vunpack.c.l.b16 %v223
    %v1023 = vunpack.c.h.b16 %v223
    %v1024 = vunpack.c.l.b16 %v224
    %v1025 = vunpack.c.h.b16 %v224
    %v1026 = vunpack.c.l.b16 %v225
    %v1027 = vunpack.c.h.b16 %v225
    %v1028 = vunpack.c.l.b16 %v226
    %v1029 = vunpack.c.h.b16 %v226
    %v1030 = vunpack.c.l.b16 %v227
    %v1031 = vunpack.c.h.b16 %v227
    %v1032 = vunpack.c.l.b16 %v228
    %v1033 = vunpack.c.h.b16 %v228
    %v1034 = vunpack.c.l.b16 %v229
    %v1035 = vunpack.c.h.b16 %v229
    %v1036 = vunpack.c.l.b16 %v230
    %v1037 = vunpack.c.h.b16 %v230
    %v1038 = vunpack.c.l.b16 %v231
    %v1039 = vunpack.c.h.b16 %v231
    %v1040 = vunpack.c.l.b16 %v232
    %v1041 = vunpack.c.h.b16 %v232
    %v1042 = vunpack.c.l.b16 %v233
    %v1043 = vunpack.c.h.b16 %v233
    %v1044 = vunpack.c.l.b16 %v234
    %v1045 = vunpack.c.h.b16 %v234
    %v1046 = vunpack.c.l.b16 %v235
    %v1047 = vunpack.c.h.b16 %v235
    %v1048 = vunpack.c.l.b16 %v236
    %v1049 = vunpack.c.h.b16 %v236
    %v1050 = vunpack.c.l.b16 %v237
    %v1051 = vunpack.c.h.b16 %v237
    %v1052 = vunpack.c.l.b16 %v238
    %v1053 = vunpack.c.h.b16 %v238
    %v1054 = vunpack.c.l.b16 %v239
    %v1055 = vunpack.c.h.b16 %v239
    %v1056 = vunpack.c.l.b16 %v240
    %v1057 = vunpack.c.h.b16 %v240
    %v1058 = vunpack.c.l.b16 %v241
    %v1059 = vunpack.c.h.b16 %v241
    %v1060 = vunpack.c.l.b16 %v242
    %v1061 = vunpack.c.h.b16 %v242
    %v1062 = vunpack.c.l.b16 %v243
    %v1063 = vunpack.c.h.b16 %v243
    %v1064 = vunpack.c.l.b16 %v244
    %v1065 = vunpack.c.h.b16 %v244
    %v1066 = vunpack.c.l.b16 %v245
    %v1067 = vunpack.c.h.b16 %v245
    %v1068 = vunpack.c.l.b16 %v246
    %v1069 = vunpack.c.h.b16 %v246
    %v1070 = vunpack.c.l.b16 %v247
    %v1071 = vunpack.c.h.b16 %v247
    %v1072 = vunpack.c.l.b16 %v248
    %v1073 = vunpack.c.h.b16 %v248
    %v1074 = vunpack.c.l.b16 %v249
    %v1075 = vunpack.c.h.b16 %v249
    %v1076 = vunpack.c.l.b16 %v250
    %v1077 = vunpack.c.h.b16 %v250
    %v1078 = vunpack.c.l.b16 %v251
    %v1079 = vunpack.c.h.b16 %v251
    %v1080 = vunpack.c.l.b16 %v252
    %v1081 = vunpack.c.h.b16 %v252
    %v1082 = vunpack.c.l.b16 %v253
    %v1083 = vunpack.c.h.b16 %v253
    %v1084 = vunpack.c.l.b16 %v254
    %v1085 = vunpack.c.h.b16 %v254
    %v1086 = vunpack.c.l.b16 %v255
    %v1087 = vunpack.c.h.b16 %v255
    %v1088 = vunpack.c.l.b16 %v256
    %v1089 = vunpack.c.h.b16 %v256
    %v1090 = vunpack.c.l.b16 %v257
    %v1091 = vunpack.c.h.b16 %v257
    %v1092 = vunpack.c.l.b16 %v258
    %v1093 = vunpack.c.h.b16 %v258
    %v1094 = vunpack.c.l.b16 %v259
    %v1095 = vunpack.c.h.b16 %v259
    %v1096 = vunpack.c.l.b16 %v260
    %v1097 = vunpack.c.h.b16 %v260
    %v1098 = vunpack.c.l.b16 %v261
    %v1099 = vunpack.c.h.b16 %v261
    %v1100 = vunpack.c.l.b16 %v262
    %v1101 = vunpack.c.h.b16 %v262
    %v1102 = vunpack.c.l.b16 %v263
    %v1103 = vunpack.c.h.b16 %v263
    %v1104 = vunpack.c.l.b16 %v264
    %v1105 = vunpack.c.h.b16 %v264
    %v1106 = vunpack.c.l.b16 %v265
    %v1107 = vunpack.c.h.b16 %v265
    %v1108 = vunpack.c.l.b16 %v266
    %v1109 = vunpack.c.h.b16 %v266
    %v1110 = vunpack.c.l.b16 %v267
    %v1111 = vunpack.c.h.b16 %v267
    %v1112 = vunpack.c.l.b16 %v268
    %v1113 = vunpack.c.h.b16 %v268
    %v1114 = vunpack.c.l.b16 %v269
    %v1115 = vunpack.c.h.b16 %v269
    %v1116 = vunpack.c.l.b16 %v270
    %v1117 = vunpack.c.h.b16 %v270
    %v1118 = vunpack.c.l.b16 %v271
    %v1119 = vunpack.c.h.b16 %v271
    %v1120 = vunpack.c.l.b16 %v272
    %v1121 = vunpack.c.h.b16 %v272
    %v1122 = vunpack.c.l.b16 %v273
    %v1123 = vunpack.c.h.b16 %v273
    %v1124 = vunpack.c.l.b16 %v274
    %v1125 = vunpack.c.h.b16 %v274
    %v1126 = vunpack.c.l.b16 %v275
    %v1127 = vunpack.c.h.b16 %v275
    %v1128 = vunpack.c.l.b16 %v276
    %v1129 = vunpack.c.h.b16 %v276
    %v1130 = vunpack.c.l.b16 %v277
    %v1131 = vunpack.c.h.b16 %v277
    %v1132 = vunpack.c.l.b16 %v278
    %v1133 = vunpack.c.h.b16 %v278
    %v1134 = vunpack.c.l.b16 %v279
    %v1135 = vunpack.c.h.b16 %v279
    %v1136 = vunpack.c.l.b16 %v280
    %v1137 = vunpack.c.h.b16 %v280
    %v1138 = vunpack.c.l.b16 %v281
    %v1139 = vunpack.c.h.b16 %v281
    %v1140 = vunpack.c.l.b16 %v282
    %v1141 = vunpack.c.h.b16 %v282
    %v1142 = vunpack.c.l.b16 %v283
    %v1143 = vunpack.c.h.b16 %v283
    %v1144 = vunpack.c.l.b16 %v284
    %v1145 = vunpack.c.h.b16 %v284
    %v1146 = vunpack.c.l.b16 %v285
    %v1147 = vunpack.c.h.b16 %v285
    %v1148 = vunpack.c.l.b16 %v286
    %v1149 = vunpack.c.h.b16 %v286
    %v1150 = vunpack.c.l.b16 %v287
    %v1151 = vunpack.c.h.b16 %v287
    %v1152 = vunpack.c.l.b16 %v288
    %v1153 = vunpack.c.h.b16 %v288
    %v1154 = vunpack.c.l.b16 %v289
    %v1155 = vunpack.c.h.b16 %v289
    %v1156 = vunpack.c.l.b16 %v290
    %v1157 = vunpack.c.h.b16 %v290
    %v1158 = vunpack.c.l.b16 %v291
    %v1159 = vunpack.c.h.b16 %v291
    %v1160 = vunpack.c.l.b16 %v292
    %v1161 = vunpack.c.h.b16 %v292
    %v1162 = vunpack.c.l.b16 %v293
    %v1163 = vunpack.c.h.b16 %v293
    %v1164 = vunpack.c.l.b16 %v294
    %v1165 = vunpack.c.h.b16 %v294
    %v1166 = vunpack.c.l.b16 %v295
    %v1167 = vunpack.c.h.b16 %v295
    %v1168 = vunpack.c.l.b16 %v296
    %v1169 = vunpack.c.h.b16 %v296
    %v1170 = vunpack.c.l.b16 %v297
    %v1171 = vunpack.c.h.b16 %v297
    %v1172 = vunpack.c.l.b16 %v298
    %v1173 = vunpack.c.h.b16 %v298
    %v1174 = vunpack.c.l.b16 %v299
    %v1175 = vunpack.c.h.b16 %v299
    %v1176 = vunpack.c.l.b16 %v300
    %v1177 = vunpack.c.h.b16 %v300
    %v1178 = vunpack.c.l.b16 %v301
    %v1179 = vunpack.c.h.b16 %v301
    %v1180 = vunpack.c.l.b16 %v302
    %v1181 = vunpack.c.h.b16 %v302
    %v1182 = vunpack.c.l.b16 %v303
    %v1183 = vunpack.c.h.b16 %v303
    %v1184 = vunpack.c.l.b16 %v304
    %v1185 = vunpack.c.h.b16 %v304
    %v1186 = vunpack.c.l.b16 %v305
    %v1187 = vunpack.c.h.b16 %v305
    %v1188 = vunpack.c.l.b16 %v306
    %v1189 = vunpack.c.h.b16 %v306
    %v1190 = vunpack.c.l.b16 %v307
    %v1191 = vunpack.c.h.b16 %v307
    %v1192 = vunpack.c.l.b16 %v308
    %v1193 = vunpack.c.h.b16 %v308
    %v1194 = vunpack.c.l.b16 %v309
    %v1195 = vunpack.c.h.b16 %v309
    %v1196 = vunpack.c.l.b16 %v310
    %v1197 = vunpack.c.h.b16 %v310
    %v1198 = vunpack.c.l.b16 %v311
    %v1199 = vunpack.c.h.b16 %v311
    %v1200 = vunpack.c.l.b16 %v312
    %v1201 = vunpack.c.h.b16 %v312
    %v1202 = vunpack.c.l.b16 %v313
    %v1203 = vunpack.c.h.b16 %v313
    %v1204 = vunpack.c.l.b16 %v314
    %v1205 = vunpack.c.h.b16 %v314
    %v1206 = vunpack.c.l.b16 %v315
    %v1207 = vunpack.c.h.b16 %v315
    %v1208 = vunpack.c.l.b16 %v316
    %v1209 = vunpack.c.h.b16 %v316
    %v1210 = vunpack.c.l.b16 %v317
    %v1211 = vunpack.c.h.b16 %v317
    %v1212 = vunpack.c.l.b16 %v318
    %v1213 = vunpack.c.h.b16 %v318
    %v1214 = vunpack.c.l.b16 %v319
    %v1215 = vunpack.c.h.b16 %v319
    %v1216 = vunpack.c.l.b16 %v320
    %v1217 = vunpack.c.h.b16 %v320
    %v1218 = vunpack.c.l.b16 %v321
    %v1219 = vunpack.c.h.b16 %v321
    %v1220 = vunpack.c.l.b16 %v322
    %v1221 = vunpack.c.h.b16 %v322
    %v1222 = vunpack.c.l.b16 %v323
    %v1223 = vunpack.c.h.b16 %v323
    %v1224 = vunpack.c.l.b16 %v324
    %v1225 = vunpack.c.h.b16 %v324
    %v1226 = vunpack.c.l.b16 %v325
    %v1227 = vunpack.c.h.b16 %v325
    %v1228 = vunpack.c.l.b16 %v326
    %v1229 = vunpack.c.h.b16 %v326
    %v1230 = vunpack.c.l.b16 %v327
    %v1231 = vunpack.c.h.b16 %v327
    %v1232 = vunpack.c.l.b16 %v328
    %v1233 = vunpack.c.h.b16 %v328
    %v1234 = vunpack.c.l.b16 %v329
    %v1235 = vunpack.c.h.b16 %v329
    %v1236 = vunpack.c.l.b16 %v330
    %v1237 = vunpack.c.h.b16 %v330
    %v1238 = vunpack.c.l.b16 %v331
    %v1239 = vunpack.c.h.b16 %v331
    %v1240 = vunpack.c.l.b16 %v332
    %v1241 = vunpack.c.h.b16 %v332
    %v1242 = vunpack.c.l.b16 %v333
    %v1243 = vunpack.c.h.b16 %v333
    %v1244 = vunpack.c.l.b16 %v334
    %v1245 = vunpack.c.h.b16 %v334
    %v1246 = vunpack.c.l.b16 %v335
    %v1247 = vunpack.c.h.b16 %v335
    %v1248 = vunpack.c.l.b16 %v336
    %v1249 = vunpack.c.h.b16 %v336
    %v1250 = vunpack.c.l.b16 %v337
    %v1251 = vunpack.c.h.b16 %v337
    %v1252 = vunpack.c.l.b16 %v338
    %v1253 = vunpack.c.h.b16 %v338
    %v1254 = vunpack.c.l.b16 %v339
    %v1255 = vunpack.c.h.b16 %v339
    %v1256 = vunpack.c.l.b16 %v340
    %v1257 = vunpack.c.h.b16 %v340
    %v1258 = vunpack.c.l.b16 %v341
    %v1259 = vunpack.c.h.b16 %v341
    %v1260 = vunpack.c.l.b16 %v342
    %v1261 = vunpack.c.h.b16 %v342
    %v1262 = vunpack.c.l.b16 %v343
    %v1263 = vunpack.c.h.b16 %v343
    %v1264 = vunpack.c.l.b16 %v344
    %v1265 = vunpack.c.h.b16 %v344
    %v1266 = vunpack.c.l.b16 %v345
    %v1267 = vunpack.c.h.b16 %v345
    %v1268 = vunpack.c.l.b16 %v346
    %v1269 = vunpack.c.h.b16 %v346
    %v1270 = vunpack.c.l.b16 %v347
    %v1271 = vunpack.c.h.b16 %v347
    %v1272 = vunpack.c.l.b16 %v348
    %v1273 = vunpack.c.h.b16 %v348
    %v1274 = vunpack.c.l.b16 %v349
    %v1275 = vunpack.c.h.b16 %v349
    %v1276 = vunpack.c.l.b16 %v350
    %v1277 = vunpack.c.h.b16 %v350
    %v1278 = vunpack.c.l.b16 %v351
    %v1279 = vunpack.c.h.b16 %v351
    %v1280 = vunpack.c.l.b16 %v352
    %v1281 = vunpack.c.h.b16 %v352
    %v1282 = vunpack.c.l.b16 %v353
    %v1283 = vunpack.c.h.b16 %v353
    %v1284 = vunpack.c.l.b16 %v354
    %v1285 = vunpack.c.h.b16 %v354
    %v1286 = vunpack.c.l.b16 %v355
    %v1287 = vunpack.c.h.b16 %v355
    %v1288 = vunpack.c.l.b16 %v356
    %v1289 = vunpack.c.h.b16 %v356
    %v1290 = vunpack.c.l.b16 %v357
    %v1291 = vunpack.c.h.b16 %v357
    %v1292 = vunpack.c.l.b16 %v358
    %v1293 = vunpack.c.h.b16 %v358
    %v1294 = vunpack.c.l.b16 %v359
    %v1295 = vunpack.c.h.b16 %v359
    %v1296 = vunpack.c.l.b16 %v360
    %v1297 = vunpack.c.h.b16 %v360
    %v1298 = vunpack.c.l.b16 %v361
    %v1299 = vunpack.c.h.b16 %v361
    %v1300 = vunpack.c.l.b16 %v362
    %v1301 = vunpack.c.h.b16 %v362
    %v1302 = vunpack.c.l.b16 %v363
    %v1303 = vunpack.c.h.b16 %v363
    %v1304 = vunpack.c.l.b16 %v364
    %v1305 = vunpack.c.h.b16 %v364
    %v1306 = vunpack.c.l.b16 %v365
    %v1307 = vunpack.c.h.b16 %v365
    %v1308 = vunpack.c.l.b16 %v366
    %v1309 = vunpack.c.h.b16 %v366
    %v1310 = vunpack.c.l.b16 %v367
    %v1311 = vunpack.c.h.b16 %v367
    %v1312 = vunpack.c.l.b16 %v368
    %v1313 = vunpack.c.h.b16 %v368
    %v1314 = vunpack.c.l.b16 %v369
    %v1315 = vunpack.c.h.b16 %v369
    %v1316 = vunpack.c.l.b16 %v370
    %v1317 = vunpack.c.h.b16 %v370
    %v1318 = vunpack.c.l.b16 %v371
    %v1319 = vunpack.c.h.b16 %v371
    %v1320 = vunpack.c.l.b16 %v372
    %v1321 = vunpack.c.h.b16 %v372
    %v1322 = vunpack.c.l.b16 %v373
    %v1323 = vunpack.c.h.b16 %v373
    %v1324 = vunpack.c.l.b16 %v374
    %v1325 = vunpack.c.h.b16 %v374
    %v1326 = vunpack.c.l.b16 %v375
    %v1327 = vunpack.c.h.b16 %v375
    %v1328 = vunpack.c.l.b16 %v376
    %v1329 = vunpack.c.h.b16 %v376
    %v1330 = vunpack.c.l.b16 %v377
    %v1331 = vunpack.c.h.b16 %v377
    %v1332 = vunpack.c.l.b16 %v378
    %v1333 = vunpack.c.h.b16 %v378
    %v1334 = vunpack.c.l.b16 %v379
    %v1335 = vunpack.c.h.b16 %v379
    %v1336 = vunpack.c.l.b16 %v380
    %v1337 = vunpack.c.h.b16 %v380
    %v1338 = vunpack.c.l.b16 %v381
    %v1339 = vunpack.c.h.b16 %v381
    %v1340 = vunpack.c.l.b16 %v382
    %v1341 = vunpack.c.h.b16 %v382
    %v1342 = vunpack.c.l.b16 %v383
    %v1343 = vunpack.c.h.b16 %v383
    %v1344 = vunpack.c.l.b16 %v384
    %v1345 = vunpack.c.h.b16 %v384
    %v1346 = vunpack.c.l.b16 %v385
    %v1347 = vunpack.c.h.b16 %v385
    %v1348 = vunpack.c.l.b16 %v386
    %v1349 = vunpack.c.h.b16 %v386
    %v1350 = vunpack.c.l.b16 %v387
    %v1351 = vunpack.c.h.b16 %v387
    %v1352 = vunpack.c.l.b16 %v388
    %v1353 = vunpack.c.h.b16 %v388
    %v1354 = vunpack.c.l.b16 %v389
    %v1355 = vunpack.c.h.b16 %v389
    %v1356 = vunpack.c.l.b16 %v390
    %v1357 = vunpack.c.h.b16 %v390
    %v1358 = vunpack.c.l.b16 %v391
    %v1359 = vunpack.c.h.b16 %v391
    %v1360 = vunpack.c.l.b16 %v392
    %v1361 = vunpack.c.h.b16 %v392
    %v1362 = vunpack.c.l.b16 %v393
    %v1363 = vunpack.c.h.b16 %v393
    %v1364 = vunpack.c.l.b16 %v394
    %v1365 = vunpack.c.h.b16 %v394
    %v1366 = vunpack.c.l.b16 %v395
    %v1367 = vunpack.c.h.b16 %v395
    %v1368 = vunpack.c.l.b16 %v396
    %v1369 = vunpack.c.h.b16 %v396
    %v1370 = vunpack.c.l.b16 %v397
    %v1371 = vunpack.c.h.b16 %v397
    %v1372 = vunpack.c.l.b16 %v398
    %v1373 = vunpack.c.h.b16 %v398
    %v1374 = vunpack.c.l.b16 %v399
    %v1375 = vunpack.c.h.b16 %v399
    %v1376 = vunpack.c.l.b16 %v400
    %v1377 = vunpack.c.h.b16 %v400
    %v1378 = vunpack.c.l.b16 %v401
    %v1379 = vunpack.c.h.b16 %v401
    %v1380 = vunpack.c.l.b16 %v402
    %v1381 = vunpack.c.h.b16 %v402
    %v1382 = vunpack.c.l.b16 %v403
    %v1383 = vunpack.c.h.b16 %v403
    %v1384 = vunpack.c.l.b16 %v404
    %v1385 = vunpack.c.h.b16 %v404
    %v1386 = vunpack.c.l.b16 %v405
    %v1387 = vunpack.c.h.b16 %v405
    %v1388 = vunpack.c.l.b16 %v406
    %v1389 = vunpack.c.h.b16 %v406
    %v1390 = vunpack.c.l.b16 %v407
    %v1391 = vunpack.c.h.b16 %v407
    %v1392 = vunpack.c.l.b16 %v408
    %v1393 = vunpack.c.h.b16 %v408
    %v1394 = vunpack.c.l.b16 %v409
    %v1395 = vunpack.c.h.b16 %v409
    %v1396 = vunpack.c.l.b16 %v410
    %v1397 = vunpack.c.h.b16 %v410
    %v1398 = vunpack.c.l.b16 %v411
    %v1399 = vunpack.c.h.b16 %v411
    %v1400 = vunpack.c.l.b16 %v412
    %v1401 = vunpack.c.h.b16 %v412
    %v1402 = vunpack.c.l.b16 %v413
    %v1403 = vunpack.c.h.b16 %v413
    %v1404 = vunpack.c.l.b16 %v414
    %v1405 = vunpack.c.h.b16 %v414
    %v1406 = vunpack.c.l.b16 %v415
    %v1407 = vunpack.c.h.b16 %v415
    %v1408 = vunpack.c.l.b16 %v416
    %v1409 = vunpack.c.h.b16 %v416
    %v1410 = vunpack.c.l.b16 %v417
    %v1411 = vunpack.c.h.b16 %v417
    %v1412 = vunpack.c.l.b16 %v418
    %v1413 = vunpack.c.h.b16 %v418
    %v1414 = vunpack.c.l.b16 %v419
    %v1415 = vunpack.c.h.b16 %v419
    %v1416 = vunpack.c.l.b16 %v420
    %v1417 = vunpack.c.h.b16 %v420
    %v1418 = vunpack.c.l.b16 %v421
    %v1419 = vunpack.c.h.b16 %v421
    %v1420 = vunpack.c.l.b16 %v422
    %v1421 = vunpack.c.h.b16 %v422
    %v1422 = vunpack.c.l.b16 %v423
    %v1423 = vunpack.c.h.b16 %v423
    %v1424 = vunpack.c.l.b16 %v424
    %v1425 = vunpack.c.h.b16 %v424
    %v1426 = vunpack.c.l.b16 %v425
    %v1427 = vunpack.c.h.b16 %v425
    %v1428 = vunpack.c.l.b16 %v426
    %v1429 = vunpack.c.h.b16 %v426
    %v1430 = vunpack.c.l.b16 %v427
    %v1431 = vunpack.c.h.b16 %v427
    %v1432 = vunpack.c.l.b16 %v428
    %v1433 = vunpack.c.h.b16 %v428
    %v1434 = vunpack.c.l.b16 %v429
    %v1435 = vunpack.c.h.b16 %v429
    %v1436 = vunpack.c.l.b16 %v430
    %v1437 = vunpack.c.h.b16 %v430
    %v1438 = vunpack.c.l.b16 %v431
    %v1439 = vunpack.c.h.b16 %v431
    %v1440 = vunpack.c.l.b16 %v432
    %v1441 = vunpack.c.h.b16 %v432
    %v1442 = vunpack.c.l.b16 %v433
    %v1443 = vunpack.c.h.b16 %v433
    %v1444 = vunpack.c.l.b16 %v434
    %v1445 = vunpack.c.h.b16 %v434
    %v1446 = vunpack.c.l.b16 %v435
    %v1447 = vunpack.c.h.b16 %v435
    %v1448 = vunpack.c.l.b16 %v436
    %v1449 = vunpack.c.h.b16 %v436
    %v1450 = vunpack.c.l.b16 %v437
    %v1451 = vunpack.c.h.b16 %v437
    %v1452 = vunpack.c.l.b16 %v438
    %v1453 = vunpack.c.h.b16 %v438
    %v1454 = vunpack.c.l.b16 %v439
    %v1455 = vunpack.c.h.b16 %v439
    %v1456 = vunpack.c.l.b16 %v440
    %v1457 = vunpack.c.h.b16 %v440
    %v1458 = vunpack.c.l.b16 %v441
    %v1459 = vunpack.c.h.b16 %v441
    %v1460 = vunpack.c.l.b16 %v442
    %v1461 = vunpack.c.h.b16 %v442
    %v1462 = vunpack.c.l.b16 %v443
    %v1463 = vunpack.c.h.b16 %v443
    %v1464 = vunpack.c.l.b16 %v444
    %v1465 = vunpack.c.h.b16 %v444
    %v1466 = vunpack.c.l.b16 %v445
    %v1467 = vunpack.c.h.b16 %v445
    %v1468 = vunpack.c.l.b16 %v446
    %v1469 = vunpack.c.h.b16 %v446
    %v1470 = vunpack.c.l.b16 %v447
    %v1471 = vunpack.c.h.b16 %v447
    %v1472 = vunpack.c.l.b16 %v448
    %v1473 = vunpack.c.h.b16 %v448
    %v1474 = vunpack.c.l.b16 %v449
    %v1475 = vunpack.c.h.b16 %v449
    %v1476 = vunpack.c.l.b16 %v450
    %v1477 = vunpack.c.h.b16 %v450
    %v1478 = vunpack.c.l.b16 %v451
    %v1479 = vunpack.c.h.b16 %v451
    %v1480 = vunpack.c.l.b16 %v452
    %v1481 = vunpack.c.h.b16 %v452
    %v1482 = vunpack.c.l.b16 %v453
    %v1483 = vunpack.c.h.b16 %v453
    %v1484 = vunpack.c.l.b16 %v454
    %v1485 = vunpack.c.h.b16 %v454
    %v1486 = vunpack.c.l.b16 %v455
    %v1487 = vunpack.c.h.b16 %v455
    %v1488 = vunpack.c.l.b16 %v456
    %v1489 = vunpack.c.h.b16 %v456
    %v1490 = vunpack.c.l.b16 %v457
    %v1491 = vunpack.c.h.b16 %v457
    %v1492 = vunpack.c.l.b16 %v458
    %v1493 = vunpack.c.h.b16 %v458
    %v1494 = vunpack.c.l.b16 %v459
    %v1495 = vunpack.c.h.b16 %v459
    %v1496 = vunpack.c.l.b16 %v460
    %v1497 = vunpack.c.h.b16 %v460
    %v1498 = vunpack.c.l.b16 %v461
    %v1499 = vunpack.c.h.b16 %v461
    %v1500 = vunpack.c.l.b16 %v462
    %v1501 = vunpack.c.h.b16 %v462
    %v1502 = vunpack.c.l.b16 %v463
    %v1503 = vunpack.c.h.b16 %v463
    %v1504 = vunpack.c.l.b16 %v464
    %v1505 = vunpack.c.h.b16 %v464
    %v1506 = vunpack.c.l.b16 %v465
    %v1507 = vunpack.c.h.b16 %v465
    %v1508 = vunpack.c.l.b16 %v466
    %v1509 = vunpack.c.h.b16 %v466
    %v1510 = vunpack.c.l.b16 %v467
    %v1511 = vunpack.c.h.b16 %v467
    %v1512 = vunpack.c.l.b16 %v468
    %v1513 = vunpack.c.h.b16 %v468
    %v1514 = vunpack.c.l.b16 %v469
    %v1515 = vunpack.c.h.b16 %v469
    %v1516 = vunpack.c.l.b16 %v470
    %v1517 = vunpack.c.h.b16 %v470
    %v1518 = vunpack.c.l.b16 %v471
    %v1519 = vunpack.c.h.b16 %v471
    %v1520 = vunpack.c.l.b16 %v472
    %v1521 = vunpack.c.h.b16 %v472
    %v1522 = vunpack.c.l.b16 %v473
    %v1523 = vunpack.c.h.b16 %v473
    %v1524 = vunpack.c.l.b16 %v474
    %v1525 = vunpack.c.h.b16 %v474
    %v1526 = vunpack.c.l.b16 %v475
    %v1527 = vunpack.c.h.b16 %v475
    %v1528 = vunpack.c.l.b16 %v476
    %v1529 = vunpack.c.h.b16 %v476
    %v1530 = vunpack.c.l.b16 %v477
    %v1531 = vunpack.c.h.b16 %v477
    %v1532 = vunpack.c.l.b16 %v478
    %v1533 = vunpack.c.h.b16 %v478
    %v1534 = vunpack.c.l.b16 %v479
    %v1535 = vunpack.c.h.b16 %v479
    %v1536 = vunpack.c.l.b16 %v480
    %v1537 = vunpack.c.h.b16 %v480
    %v1538 = vunpack.c.l.b16 %v481
    %v1539 = vunpack.c.h.b16 %v481
    %v1540 = vunpack.c.l.b16 %v482
    %v1541 = vunpack.c.h.b16 %v482
    %v1542 = vunpack.c.l.b16 %v483
    %v1543 = vunpack.c.h.b16 %v483
    %v1544 = vunpack.c.l.b16 %v484
    %v1545 = vunpack.c.h.b16 %v484
    %v1546 = vunpack.c.l.b16 %v485
    %v1547 = vunpack.c.h.b16 %v485
    %v1548 = vunpack.c.l.b16 %v486
    %v1549 = vunpack.c.h.b16 %v486
    %v1550 = vunpack.c.l.b16 %v487
    %v1551 = vunpack.c.h.b16 %v487
    %v1552 = vunpack.c.l.b16 %v488
    %v1553 = vunpack.c.h.b16 %v488
    %v1554 = vunpack.c.l.b16 %v489
    %v1555 = vunpack.c.h.b16 %v489
    %v1556 = vpack.c.b16 %v856, %v852
    %v1557 = vpack.c.b16 %v857, %v853
    %v1558 = vpack.c.b16 %v858, %v854
    %v1559 = vpack.c.b16 %v859, %v855
    %v1560 = vpack.c.b16 %v864, %v860
    %v1561 = vpack.c.b16 %v865, %v861
    %v1562 = vpack.c.b16 %v866, %v862
    %v1563 = vpack.c.b16 %v867, %v863
    %v1564 = vpack.c.b16 %v872, %v868
    %v1565 = vpack.c.b16 %v873, %v869
    %v1566 = vpack.c.b16 %v874, %v870
    %v1567 = vpack.c.b16 %v875, %v871
    %v1568 = vpack.c.b16 %v880, %v876
    %v1569 = vpack.c.b16 %v881, %v877
    %v1570 = vpack.c.b16 %v882, %v878
    %v1571 = vpack.c.b16 %v883, %v879
    %v1572 = vpack.c.b16 %v888, %v884
    %v1573 = vpack.c.b16 %v889, %v885
    %v1574 = vpack.c.b16 %v890, %v886
    %v1575 = vpack.c.b16 %v891, %v887
    %v1576 = vpack.c.b16 %v896, %v892
    %v1577 = vpack.c.b16 %v897, %v893
    %v1578 = vpack.c.b16 %v898, %v894
    %v1579 = vpack.c.b16 %v899, %v895
    %v1580 = vpack.c.b16 %v904, %v900
    %v1581 = vpack.c.b16 %v905, %v901
    %v1582 = vpack.c.b16 %v906, %v902
    %v1583 = vpack.c.b16 %v907, %v903
    %v1584 = vpack.c.b16 %v912, %v908
    %v1585 = vpack.c.b16 %v913, %v909
    %v1586 = vpack.c.b16 %v914, %v910
    %v1587 = vpack.c.b16 %v915, %v911
    %v1588 = vpack.c.b16 %v920, %v916
    %v1589 = vpack.c.b16 %v921, %v917
    %v1590 = vpack.c.b16 %v922, %v918
    %v1591 = vpack.c.b16 %v923, %v919
    %v1592 = vpack.c.b16 %v928, %v924
    %v1593 = vpack.c.b16 %v929, %v925
    %v1594 = vpack.c.b16 %v930, %v926
    %v1595 = vpack.c.b16 %v931, %v927
    %v1596 = vpack.c.b16 %v936, %v932
    %v1597 = vpack.c.b16 %v937, %v933
    %v1598 = vpack.c.b16 %v938, %v934
    %v1599 = vpack.c.b16 %v939, %v935
    %v1600 = vpack.c.b16 %v944, %v940
    %v1601 = vpack.c.b16 %v945, %v941
    %v1602 = vpack.c.b16 %v946, %v942
    %v1603 = vpack.c.b16 %v947, %v943
    %v1604 = vpack.c.b16 %v952, %v948
    %v1605 = vpack.c.b16 %v953, %v949
    %v1606 = vpack.c.b16 %v954, %v950
    %v1607 = vpack.c.b16 %v955, %v951
    %v1608 = vpack.c.b16 %v960, %v956
    %v1609 = vpack.c.b16 %v961, %v957
    %v1610 = vpack.c.b16 %v962, %v958
    %v1611 = vpack.c.b16 %v963, %v959
    %v1612 = vpack.c.b16 %v968, %v964
    %v1613 = vpack.c.b16 %v969, %v965
    %v1614 = vpack.c.b16 %v970, %v966
    %v1615 = vpack.c.b16 %v971, %v967
    %v1616 = vpack.c.b16 %v976, %v972
    %v1617 = vpack.c.b16 %v977, %v973
    %v1618 = vpack.c.b16 %v978, %v974
    %v1619 = vpack.c.b16 %v979, %v975
    %v1620 = vpack.c.b16 %v984, %v980
    %v1621 = vpack.c.b16 %v985, %v981
    %v1622 = vpack.c.b16 %v986, %v982
    %v1623 = vpack.c.b16 %v987, %v983
    %v1624 = vpack.c.b16 %v992, %v988
    %v1625 = vpack.c.b16 %v993, %v989
    %v1626 = vpack.c.b16 %v994, %v990
    %v1627 = vpack.c.b16 %v995, %v991
    %v1628 = vpack.c.b16 %v1000, %v996
    %v1629 = vpack.c.b16 %v1001, %v997
    %v1630 = vpack.c.b16 %v1002, %v998
    %v1631 = vpack.c.b16 %v1003, %v999
    %v1632 = vpack.c.b16 %v1008, %v1004
    %v1633 = vpack.c.b16 %v1009, %v1005
    %v1634 = vpack.c.b16 %v1010, %v1006
    %v1635 = vpack.c.b16 %v1011, %v1007
    %v1636 = vpack.c.b16 %v1016, %v1012
    %v1637 = vpack.c.b16 %v1017, %v1013
    %v1638 = vpack.c.b16 %v1018, %v1014
    %v1639 = vpack.c.b16 %v1019, %v1015
    %v1640 = vpack.c.b16 %v1024, %v1020
    %v1641 = vpack.c.b16 %v1025, %v1021
    %v1642 = vpack.c.b16 %v1026, %v1022
    %v1643 = vpack.c.b16 %v1027, %v1023
    %v1644 = vpack.c.b16 %v1032, %v1028
    %v1645 = vpack.c.b16 %v1033, %v1029
    %v1646 = vpack.c.b16 %v1034, %v1030
    %v1647 = vpack.c.b16 %v1035, %v1031
    %v1648 = vpack.c.b16 %v1040, %v1036
    %v1649 = vpack.c.b16 %v1041, %v1037
    %v1650 = vpack.c.b16 %v1042, %v1038
    %v1651 = vpack.c.b16 %v1043, %v1039
    %v1652 = vpack.c.b16 %v1048, %v1044
    %v1653 = vpack.c.b16 %v1049, %v1045
    %v1654 = vpack.c.b16 %v1050, %v1046
    %v1655 = vpack.c.b16 %v1051, %v1047
    %v1656 = vpack.c.b16 %v1056, %v1052
    %v1657 = vpack.c.b16 %v1057, %v1053
    %v1658 = vpack.c.b16 %v1058, %v1054
    %v1659 = vpack.c.b16 %v1059, %v1055
    %v1660 = vpack.c.b16 %v1064, %v1060
    %v1661 = vpack.c.b16 %v1065, %v1061
    %v1662 = vpack.c.b16 %v1066, %v1062
    %v1663 = vpack.c.b16 %v1067, %v1063
    %v1664 = vpack.c.b16 %v1072, %v1068
    %v1665 = vpack.c.b16 %v1073, %v1069
    %v1666 = vpack.c.b16 %v1074, %v1070
    %v1667 = vpack.c.b16 %v1075, %v1071
    %v1668 = vpack.c.b16 %v1080, %v1076
    %v1669 = vpack.c.b16 %v1081, %v1077
    %v1670 = vpack.c.b16 %v1082, %v1078
    %v1671 = vpack.c.b16 %v1083, %v1079
    %v1672 = vpack.c.b16 %v1088, %v1084
    %v1673 = vpack.c.b16 %v1089, %v1085
    %v1674 = vpack.c.b16 %v1090, %v1086
    %v1675 = vpack.c.b16 %v1091, %v1087
    %v1676 = vpack.c.b16 %v1096, %v1092
    %v1677 = vpack.c.b16 %v1097, %v1093
    %v1678 = vpack.c.b16 %v1098, %v1094
    %v1679 = vpack.c.b16 %v1099, %v1095
    %v1680 = vpack.c.b16 %v1104, %v1100
    %v1681 = vpack.c.b16 %v1105, %v1101
    %v1682 = vpack.c.b16 %v1106, %v1102
    %v1683 = vpack.c.b16 %v1107, %v1103
    %v1684 = vpack.c.b16 %v1112, %v1108
    %v1685 = vpack.c.b16 %v1113, %v1109
    %v1686 = vpack.c.b16 %v1114, %v1110
    %v1687 = vpack.c.b16 %v1115, %v1111
    %v1688 = vpack.c.b16 %v1120, %v1116
    %v1689 = vpack.c.b16 %v1121, %v1117
    %v1690 = vpack.c.b16 %v1122, %v1118
    %v1691 = vpack.c.b16 %v1123, %v1119
    %v1692 = vpack.c.b16 %v1128, %v1124
    %v1693 = vpack.c.b16 %v1129, %v1125
    %v1694 = vpack.c.b16 %v1130, %v1126
    %v1695 = vpack.c.b16 %v1131, %v1127
    %v1696 = vpack.c.b16 %v1136, %v1132
    %v1697 = vpack.c.b16 %v1137, %v1133
    %v1698 = vpack.c.b16 %v1138, %v1134
    %v1699 = vpack.c.b16 %v1139, %v1135
    %v1700 = vpack.c.b16 %v1144, %v1140
    %v1701 = vpack.c.b16 %v1145, %v1141
    %v1702 = vpack.c.b16 %v1146, %v1142
    %v1703 = vpack.c.b16 %v1147, %v1143
    %v1704 = vpack.c.b16 %v1152, %v1148
    %v1705 = vpack.c.b16 %v1153, %v1149
    %v1706 = vpack.c.b16 %v1154, %v1150
    %v1707 = vpack.c.b16 %v1155, %v1151
    %v1708 = vpack.c.b16 %v1160, %v1156
    %v1709 = vpack.c.b16 %v1161, %v1157
    %v1710 = vpack.c.b16 %v1162, %v1158
    %v1711 = vpack.c.b16 %v1163, %v1159
    %v1712 = vpack.c.b16 %v1168, %v1164
    %v1713 = vpack.c.b16 %v1169, %v1165
    %v1714 = vpack.c.b16 %v1170, %v1166
    %v1715 = vpack.c.b16 %v1171, %v1167
    %v1716 = vpack.c.b16 %v1176, %v1172
    %v1717 = vpack.c.b16 %v1177, %v1173
    %v1718 = vpack.c.b16 %v1178, %v1174
    %v1719 = vpack.c.b16 %v1179, %v1175
    %v1720 = vpack.c.b16 %v1184, %v1180
    %v1721 = vpack.c.b16 %v1185, %v1181
    %v1722 = vpack.c.b16 %v1186, %v1182
    %v1723 = vpack.c.b16 %v1187, %v1183
    %v1724 = vpack.c.b16 %v1192, %v1188
    %v1725 = vpack.c.b16 %v1193, %v1189
    %v1726 = vpack.c.b16 %v1194, %v1190
    %v1727 = vpack.c.b16 %v1195, %v1191
    %v1728 = vpack.c.b16 %v1200, %v1196
    %v1729 = vpack.c.b16 %v1201, %v1197
    %v1730 = vpack.c.b16 %v1202, %v1198
    %v1731 = vpack.c.b16 %v1203, %v1199
    %v1732 = vpack.c.b16 %v1208, %v1204
    %v1733 = vpack.c.b16 %v1209, %v1205
    %v1734 = vpack.c.b16 %v1210, %v1206
    %v1735 = vpack.c.b16 %v1211, %v1207
    %v1736 = vpack.c.b16 %v1216, %v1212
    %v1737 = vpack.c.b16 %v1217, %v1213
    %v1738 = vpack.c.b16 %v1218, %v1214
    %v1739 = vpack.c.b16 %v1219, %v1215
    %v1740 = vpack.c.b16 %v1224, %v1220
    %v1741 = vpack.c.b16 %v1225, %v1221
    %v1742 = vpack.c.b16 %v1226, %v1222
    %v1743 = vpack.c.b16 %v1227, %v1223
    %v1744 = vpack.c.b16 %v1232, %v1228
    %v1745 = vpack.c.b16 %v1233, %v1229
    %v1746 = vpack.c.b16 %v1234, %v1230
    %v1747 = vpack.c.b16 %v1235, %v1231
    %v1748 = vpack.c.b16 %v1240, %v1236
    %v1749 = vpack.c.b16 %v1241, %v1237
    %v1750 = vpack.c.b16 %v1242, %v1238
    %v1751 = vpack.c.b16 %v1243, %v1239
    %v1752 = vpack.c.b16 %v1248, %v1244
    %v1753 = vpack.c.b16 %v1249, %v1245
    %v1754 = vpack.c.b16 %v1250, %v1246
    %v1755 = vpack.c.b16 %v1251, %v1247
    %v1756 = vpack.c.b16 %v1256, %v1252
    %v1757 = vpack.c.b16 %v1257, %v1253
    %v1758 = vpack.c.b16 %v1258, %v1254
    %v1759 = vpack.c.b16 %v1259, %v1255
    %v1760 = vpack.c.b16 %v1264, %v1260
    %v1761 = vpack.c.b16 %v1265, %v1261
    %v1762 = vpack.c.b16 %v1266, %v1262
    %v1763 = vpack.c.b16 %v1267, %v1263
    %v1764 = vpack.c.b16 %v1272, %v1268
    %v1765 = vpack.c.b16 %v1273, %v1269
    %v1766 = vpack.c.b16 %v1274, %v1270
    %v1767 = vpack.c.b16 %v1275, %v1271
    %v1768 = vpack.c.b16 %v1280, %v1276
    %v1769 = vpack.c.b16 %v1281, %v1277
    %v1770 = vpack.c.b16 %v1282, %v1278
    %v1771 = vpack.c.b16 %v1283, %v1279
    %v1772 = vpack.c.b16 %v1288, %v1284
    %v1773 = vpack.c.b16 %v1289, %v1285
    %v1774 = vpack.c.b16 %v1290, %v1286
    %v1775 = vpack.c.b16 %v1291, %v1287
    %v1776 = vpack.c.b16 %v1296, %v1292
    %v1777 = vpack.c.b16 %v1297, %v1293
    %v1778 = vpack.c.b16 %v1298, %v1294
    %v1779 = vpack.c.b16 %v1299, %v1295
    %v1780 = vpack.c.b16 %v1304, %v1300
    %v1781 = vpack.c.b16 %v1305, %v1301
    %v1782 = vpack.c.b16 %v1306, %v1302
    %v1783 = vpack.c.b16 %v1307, %v1303
    %v1784 = vpack.c.b16 %v1312, %v1308
    %v1785 = vpack.c.b16 %v1313, %v1309
    %v1786 = vpack.c.b16 %v1314, %v1310
    %v1787 = vpack.c.b16 %v1315, %v1311
    %v1788 = vpack.c.b16 %v1320, %v1316
    %v1789 = vpack.c.b16 %v1321, %v1317
    %v1790 = vpack.c.b16 %v1322, %v1318
    %v1791 = vpack.c.b16 %v1323, %v1319
    %v1792 = vpack.c.b16 %v1328, %v1324
    %v1793 = vpack.c.b16 %v1329, %v1325
    %v1794 = vpack.c.b16 %v1330, %v1326
    %v1795 = vpack.c.b16 %v1331, %v1327
    %v1796 = vpack.c.b16 %v1336, %v1332
    %v1797 = vpack.c.b16 %v1337, %v1333
    %v1798 = vpack.c.b16 %v1338, %v1334
    %v1799 = vpack.c.b16 %v1339, %v1335
    %v1800 = vpack.c.b16 %v1344, %v1340
    %v1801 = vpack.c.b16 %v1345, %v1341
    %v1802 = vpack.c.b16 %v1346, %v1342
    %v1803 = vpack.c.b16 %v1347, %v1343
    %v1804 = vpack.c.b16 %v1352, %v1348
    %v1805 = vpack.c.b16 %v1353, %v1349
    %v1806 = vpack.c.b16 %v1354, %v1350
    %v1807 = vpack.c.b16 %v1355, %v1351
    %v1808 = vpack.c.b16 %v1360, %v1356
    %v1809 = vpack.c.b16 %v1361, %v1357
    %v1810 = vpack.c.b16 %v1362, %v1358
    %v1811 = vpack.c.b16 %v1363, %v1359
    %v1812 = vpack.c.b16 %v1368, %v1364
    %v1813 = vpack.c.b16 %v1369, %v1365
    %v1814 = vpack.c.b16 %v1370, %v1366
    %v1815 = vpack.c.b16 %v1371, %v1367
    %v1816 = vpack.c.b16 %v1376, %v1372
    %v1817 = vpack.c.b16 %v1377, %v1373
    %v1818 = vpack.c.b16 %v1378, %v1374
    %v1819 = vpack.c.b16 %v1379, %v1375
    %v1820 = vpack.c.b16 %v1384, %v1380
    %v1821 = vpack.c.b16 %v1385, %v1381
    %v1822 = vpack.c.b16 %v1386, %v1382
    %v1823 = vpack.c.b16 %v1387, %v1383
    %v1824 = vpack.c.b16 %v1392, %v1388
    %v1825 = vpack.c.b16 %v1393, %v1389
    %v1826 = vpack.c.b16 %v1394, %v1390
    %v1827 = vpack.c.b16 %v1395, %v1391
    %v1828 = vpack.c.b16 %v1400, %v1396
    %v1829 = vpack.c.b16 %v1401, %v1397
    %v1830 = vpack.c.b16 %v1402, %v1398
    %v1831 = vpack.c.b16 %v1403, %v1399
    %v1832 = vpack.c.b16 %v1408, %v1404
    %v1833 = vpack.c.b16 %v1409, %v1405
    %v1834 = vpack.c.b16 %v1410, %v1406
    %v1835 = vpack.c.b16 %v1411, %v1407
    %v1836 = vpack.c.b16 %v1416, %v1412
    %v1837 = vpack.c.b16 %v1417, %v1413
    %v1838 = vpack.c.b16 %v1418, %v1414
    %v1839 = vpack.c.b16 %v1419, %v1415
    %v1840 = vpack.c.b16 %v1424, %v1420
    %v1841 = vpack.c.b16 %v1425, %v1421
    %v1842 = vpack.c.b16 %v1426, %v1422
    %v1843 = vpack.c.b16 %v1427, %v1423
    %v1844 = vpack.c.b16 %v1432, %v1428
    %v1845 = vpack.c.b16 %v1433, %v1429
    %v1846 = vpack.c.b16 %v1434, %v1430
    %v1847 = vpack.c.b16 %v1435, %v1431
    %v1848 = vpack.c.b16 %v1440, %v1436
    %v1849 = vpack.c.b16 %v1441, %v1437
    %v1850 = vpack.c.b16 %v1442, %v1438
    %v1851 = vpack.c.b16 %v1443, %v1439
    %v1852 = vpack.c.b16 %v1448, %v1444
    %v1853 = vpack.c.b16 %v1449, %v1445
    %v1854 = vpack.c.b16 %v1450, %v1446
    %v1855 = vpack.c.b16 %v1451, %v1447
    %v1856 = vpack.c.b16 %v1456, %v1452
    %v1857 = vpack.c.b16 %v1457, %v1453
    %v1858 = vpack.c.b16 %v1458, %v1454
    %v1859 = vpack.c.b16 %v1459, %v1455
    %v1860 = vpack.c.b16 %v1464, %v1460
    %v1861 = vpack.c.b16 %v1465, %v1461
    %v1862 = vpack.c.b16 %v1466, %v1462
    %v1863 = vpack.c.b16 %v1467, %v1463
    %v1864 = vpack.c.b16 %v1472, %v1468
    %v1865 = vpack.c.b16 %v1473, %v1469
    %v1866 = vpack.c.b16 %v1474, %v1470
    %v1867 = vpack.c.b16 %v1475, %v1471
    %v1868 = vpack.c.b16 %v1480, %v1476
    %v1869 = vpack.c.b16 %v1481, %v1477
    %v1870 = vpack.c.b16 %v1482, %v1478
    %v1871 = vpack.c.b16 %v1483, %v1479
    %v1872 = vpack.c.b16 %v1488, %v1484
    %v1873 = vpack.c.b16 %v1489, %v1485
    %v1874 = vpack.c.b16 %v1490, %v1486
    %v1875 = vpack.c.b16 %v1491, %v1487
    %v1876 = vpack.c.b16 %v1496, %v1492
    %v1877 = vpack.c.b16 %v1497, %v1493
    %v1878 = vpack.c.b16 %v1498, %v1494
    %v1879 = vpack.c.b16 %v1499, %v1495
    %v1880 = vpack.c.b16 %v1504, %v1500
    %v1881 = vpack.c.b16 %v1505, %v1501
    %v1882 = vpack.c.b16 %v1506, %v1502
    %v1883 = vpack.c.b16 %v1507, %v1503
    %v1884 = vpack.c.b16 %v1512, %v1508
    %v1885 = vpack.c.b16 %v1513, %v1509
    %v1886 = vpack.c.b16 %v1514, %v1510
    %v1887 = vpack.c.b16 %v1515, %v1511
    %v1888 = vpack.c.b16 %v1520, %v1516
    %v1889 = vpack.c.b16 %v1521, %v1517
    %v1890 = vpack.c.b16 %v1522, %v1518
    %v1891 = vpack.c.b16 %v1523, %v1519
    %v1892 = vpack.c.b16 %v1528, %v1524
    %v1893 = vpack.c.b16 %v1529, %v1525
    %v1894 = vpack.c.b16 %v1530, %v1526
    %v1895 = vpack.c.b16 %v1531, %v1527
    %v1896 = vpack.c.b16 %v1536, %v1532
    %v1897 = vpack.c.b16 %v1537, %v1533
    %v1898 = vpack.c.b16 %v1538, %v1534
    %v1899 = vpack.c.b16 %v1539, %v1535
    %v1900 = vpack.c.b16 %v1544, %v1540
    %v1901 = vpack.c.b16 %v1545, %v1541
    %v1902 = vpack.c.b16 %v1546, %v1542
    %v1903 = vpack.c.b16 %v1547, %v1543
    %v1904 = vpack.c.b16 %v1552, %v1548
    %v1905 = vpack.c.b16 %v1553, %v1549
    %v1906 = vpack.c.b16 %v1554, %v1550
    %v1907 = vpack.c.b16 %v1555, %v1551
    %vm2256 = vcmask 1014784
    %v2258 = vsel %vm2256, %v137, 0
    %vm2260 = vcmask 1045504
    %v2262 = vsel %vm2260, %v1904, 0
    %v2265 = vsel %vm2260, %v1905, 0
    %v2268 = vsel %vm2260, %v1906, 0
    %v2271 = vsel %vm2260, %v1907, 0
    %2273 = vmatpush.bf16.msra.mxu0 %v1584
    %2274 = vmatpush.bf16.msra.mxu0 %v1580
    %2275 = vmatpush.bf16.msra.mxu0 %v1576
    %2276 = vmatpush.bf16.msra.mxu0 %v1572
    %2277 = vmatpush.bf16.msra.mxu0 %v1568
    %2278 = vmatpush.bf16.msra.mxu0 %v1564
    %2279 = vmatpush.bf16.msra.mxu0 %v1560
    %2280 = vmatpush.bf16.msra.mxu0 %v1556
    %2281 = vmatmul.bf16.gmra.mxu0 %v127
    %v2282 = vpop.f32.mrf.mxu0
    %v2283 = vadd.f32 %v492, %v2282
    %v2284 = vpop.f32.mrf.mxu0
    %2285 = vdwg.mxu0
    %2286 = vmatpush.bf16.msra.mxu0 %v1616
    %2287 = vmatpush.bf16.msra.mxu0 %v1612
    %2288 = vmatpush.bf16.msra.mxu0 %v1608
    %2289 = vmatpush.bf16.msra.mxu0 %v1604
    %2290 = vmatpush.bf16.msra.mxu0 %v1600
    %2291 = vmatpush.bf16.msra.mxu0 %v1596
    %2292 = vmatpush.bf16.msra.mxu0 %v1592
    %2293 = vmatpush.bf16.msra.mxu0 %v1588
    %2294 = vmatmul.bf16.gmra.mxu0 %v128
    %v2295 = vpop.f32.mrf.mxu0
    %v2296 = vadd.f32 %v2283, %v2295
    %v2297 = vpop.f32.mrf.mxu0
    %2298 = vdwg.mxu0
    %2299 = vmatpush.bf16.msra.mxu0 %v1648
    %2300 = vmatpush.bf16.msra.mxu0 %v1644
    %2301 = vmatpush.bf16.msra.mxu0 %v1640
    %2302 = vmatpush.bf16.msra.mxu0 %v1636
    %2303 = vmatpush.bf16.msra.mxu0 %v1632
    %2304 = vmatpush.bf16.msra.mxu0 %v1628
    %2305 = vmatpush.bf16.msra.mxu0 %v1624
    %2306 = vmatpush.bf16.msra.mxu0 %v1620
    %2307 = vmatmul.bf16.gmra.mxu0 %v129
    %v2308 = vpop.f32.mrf.mxu0
    %v2309 = vadd.f32 %v2296, %v2308
    %v2310 = vpop.f32.mrf.mxu0
    %2311 = vdwg.mxu0
    %2312 = vmatpush.bf16.msra.mxu0 %v1680
    %2313 = vmatpush.bf16.msra.mxu0 %v1676
    %2314 = vmatpush.bf16.msra.mxu0 %v1672
    %2315 = vmatpush.bf16.msra.mxu0 %v1668
    %2316 = vmatpush.bf16.msra.mxu0 %v1664
    %2317 = vmatpush.bf16.msra.mxu0 %v1660
    %2318 = vmatpush.bf16.msra.mxu0 %v1656
    %2319 = vmatpush.bf16.msra.mxu0 %v1652
    %2320 = vmatmul.bf16.gmra.mxu0 %v130
    %v2321 = vpop.f32.mrf.mxu0
    %v2322 = vadd.f32 %v2309, %v2321
    %v2323 = vpop.f32.mrf.mxu0
    %2324 = vdwg.mxu0
    %2325 = vmatpush.bf16.msra.mxu0 %v1712
    %2326 = vmatpush.bf16.msra.mxu0 %v1708
    %2327 = vmatpush.bf16.msra.mxu0 %v1704
    %2328 = vmatpush.bf16.msra.mxu0 %v1700
    %2329 = vmatpush.bf16.msra.mxu0 %v1696
    %2330 = vmatpush.bf16.msra.mxu0 %v1692
    %2331 = vmatpush.bf16.msra.mxu0 %v1688
    %2332 = vmatpush.bf16.msra.mxu0 %v1684
    %2333 = vmatmul.bf16.gmra.mxu0 %v131
    %v2334 = vpop.f32.mrf.mxu0
    %v2335 = vadd.f32 %v2322, %v2334
    %v2336 = vpop.f32.mrf.mxu0
    %2337 = vdwg.mxu0
    %2338 = vmatpush.bf16.msra.mxu0 %v1744
    %2339 = vmatpush.bf16.msra.mxu0 %v1740
    %2340 = vmatpush.bf16.msra.mxu0 %v1736
    %2341 = vmatpush.bf16.msra.mxu0 %v1732
    %2342 = vmatpush.bf16.msra.mxu0 %v1728
    %2343 = vmatpush.bf16.msra.mxu0 %v1724
    %2344 = vmatpush.bf16.msra.mxu0 %v1720
    %2345 = vmatpush.bf16.msra.mxu0 %v1716
    %2346 = vmatmul.bf16.gmra.mxu0 %v132
    %v2347 = vpop.f32.mrf.mxu0
    %v2348 = vadd.f32 %v2335, %v2347
    %v2349 = vpop.f32.mrf.mxu0
    %2350 = vdwg.mxu0
    %2351 = vmatpush.bf16.msra.mxu0 %v1776
    %2352 = vmatpush.bf16.msra.mxu0 %v1772
    %2353 = vmatpush.bf16.msra.mxu0 %v1768
    %2354 = vmatpush.bf16.msra.mxu0 %v1764
    %2355 = vmatpush.bf16.msra.mxu0 %v1760
    %2356 = vmatpush.bf16.msra.mxu0 %v1756
    %2357 = vmatpush.bf16.msra.mxu0 %v1752
    %2358 = vmatpush.bf16.msra.mxu0 %v1748
    %2359 = vmatmul.bf16.gmra.mxu0 %v133
    %v2360 = vpop.f32.mrf.mxu0
    %v2361 = vadd.f32 %v2348, %v2360
    %v2362 = vpop.f32.mrf.mxu0
    %2363 = vdwg.mxu0
    %2364 = vmatpush.bf16.msra.mxu0 %v1808
    %2365 = vmatpush.bf16.msra.mxu0 %v1804
    %2366 = vmatpush.bf16.msra.mxu0 %v1800
    %2367 = vmatpush.bf16.msra.mxu0 %v1796
    %2368 = vmatpush.bf16.msra.mxu0 %v1792
    %2369 = vmatpush.bf16.msra.mxu0 %v1788
    %2370 = vmatpush.bf16.msra.mxu0 %v1784
    %2371 = vmatpush.bf16.msra.mxu0 %v1780
    %2372 = vmatmul.bf16.gmra.mxu0 %v134
    %v2373 = vpop.f32.mrf.mxu0
    %v2374 = vadd.f32 %v2361, %v2373
    %v2375 = vpop.f32.mrf.mxu0
    %2376 = vdwg.mxu0
    %2377 = vmatpush.bf16.msra.mxu0 %v1840
    %2378 = vmatpush.bf16.msra.mxu0 %v1836
    %2379 = vmatpush.bf16.msra.mxu0 %v1832
    %2380 = vmatpush.bf16.msra.mxu0 %v1828
    %2381 = vmatpush.bf16.msra.mxu0 %v1824
    %2382 = vmatpush.bf16.msra.mxu0 %v1820
    %2383 = vmatpush.bf16.msra.mxu0 %v1816
    %2384 = vmatpush.bf16.msra.mxu0 %v1812
    %2385 = vmatmul.bf16.gmra.mxu0 %v135
    %v2386 = vpop.f32.mrf.mxu0
    %v2387 = vadd.f32 %v2374, %v2386
    %v2388 = vpop.f32.mrf.mxu0
    %2389 = vdwg.mxu0
    %2390 = vmatpush.bf16.msra.mxu0 %v1872
    %2391 = vmatpush.bf16.msra.mxu0 %v1868
    %2392 = vmatpush.bf16.msra.mxu0 %v1864
    %2393 = vmatpush.bf16.msra.mxu0 %v1860
    %2394 = vmatpush.bf16.msra.mxu0 %v1856
    %2395 = vmatpush.bf16.msra.mxu0 %v1852
    %2396 = vmatpush.bf16.msra.mxu0 %v1848
    %2397 = vmatpush.bf16.msra.mxu0 %v1844
    %2398 = vmatmul.bf16.gmra.mxu0 %v136
    %v2399 = vpop.f32.mrf.mxu0
    %v2400 = vadd.f32 %v2387, %v2399
    %v2401 = vpop.f32.mrf.mxu0
    %2402 = vdwg.mxu0
    %2403 = vmatpush.bf16.msra.mxu0 %v2262
    %2404 = vmatpush.bf16.msra.mxu0 %v1900
    %2405 = vmatpush.bf16.msra.mxu0 %v1896
    %2406 = vmatpush.bf16.msra.mxu0 %v1892
    %2407 = vmatpush.bf16.msra.mxu0 %v1888
    %2408 = vmatpush.bf16.msra.mxu0 %v1884
    %2409 = vmatpush.bf16.msra.mxu0 %v1880
    %2410 = vmatpush.bf16.msra.mxu0 %v1876
    %2411 = vmatmul.bf16.gmra.mxu0 %v2258
    %v2412 = vpop.f32.mrf.mxu0
    %v2413 = vadd.f32 %v2400, %v2412
    %v2414 = vpop.f32.mrf.mxu0
    %2415 = vdwg.mxu0
    %2416 = vmatpush.bf16.msra.mxu0 %v1585
    %2417 = vmatpush.bf16.msra.mxu0 %v1581
    %2418 = vmatpush.bf16.msra.mxu0 %v1577
    %2419 = vmatpush.bf16.msra.mxu0 %v1573
    %2420 = vmatpush.bf16.msra.mxu0 %v1569
    %2421 = vmatpush.bf16.msra.mxu0 %v1565
    %2422 = vmatpush.bf16.msra.mxu0 %v1561
    %2423 = vmatpush.bf16.msra.mxu0 %v1557
    %2424 = vmatmul.bf16.gmra.mxu0 %v127
    %v2425 = vpop.f32.mrf.mxu0
    %v2426 = vadd.f32 %v493, %v2425
    %v2427 = vpop.f32.mrf.mxu0
    %2428 = vdwg.mxu0
    %2429 = vmatpush.bf16.msra.mxu0 %v1617
    %2430 = vmatpush.bf16.msra.mxu0 %v1613
    %2431 = vmatpush.bf16.msra.mxu0 %v1609
    %2432 = vmatpush.bf16.msra.mxu0 %v1605
    %2433 = vmatpush.bf16.msra.mxu0 %v1601
    %2434 = vmatpush.bf16.msra.mxu0 %v1597
    %2435 = vmatpush.bf16.msra.mxu0 %v1593
    %2436 = vmatpush.bf16.msra.mxu0 %v1589
    %2437 = vmatmul.bf16.gmra.mxu0 %v128
    %v2438 = vpop.f32.mrf.mxu0
    %v2439 = vadd.f32 %v2426, %v2438
    %v2440 = vpop.f32.mrf.mxu0
    %2441 = vdwg.mxu0
    %2442 = vmatpush.bf16.msra.mxu0 %v1649
    %2443 = vmatpush.bf16.msra.mxu0 %v1645
    %2444 = vmatpush.bf16.msra.mxu0 %v1641
    %2445 = vmatpush.bf16.msra.mxu0 %v1637
    %2446 = vmatpush.bf16.msra.mxu0 %v1633
    %2447 = vmatpush.bf16.msra.mxu0 %v1629
    %2448 = vmatpush.bf16.msra.mxu0 %v1625
    %2449 = vmatpush.bf16.msra.mxu0 %v1621
    %2450 = vmatmul.bf16.gmra.mxu0 %v129
    %v2451 = vpop.f32.mrf.mxu0
    %v2452 = vadd.f32 %v2439, %v2451
    %v2453 = vpop.f32.mrf.mxu0
    %2454 = vdwg.mxu0
    %2455 = vmatpush.bf16.msra.mxu0 %v1681
    %2456 = vmatpush.bf16.msra.mxu0 %v1677
    %2457 = vmatpush.bf16.msra.mxu0 %v1673
    %2458 = vmatpush.bf16.msra.mxu0 %v1669
    %2459 = vmatpush.bf16.msra.mxu0 %v1665
    %2460 = vmatpush.bf16.msra.mxu0 %v1661
    %2461 = vmatpush.bf16.msra.mxu0 %v1657
    %2462 = vmatpush.bf16.msra.mxu0 %v1653
    %2463 = vmatmul.bf16.gmra.mxu0 %v130
    %v2464 = vpop.f32.mrf.mxu0
    %v2465 = vadd.f32 %v2452, %v2464
    %v2466 = vpop.f32.mrf.mxu0
    %2467 = vdwg.mxu0
    %2468 = vmatpush.bf16.msra.mxu0 %v1713
    %2469 = vmatpush.bf16.msra.mxu0 %v1709
    %2470 = vmatpush.bf16.msra.mxu0 %v1705
    %2471 = vmatpush.bf16.msra.mxu0 %v1701
    %2472 = vmatpush.bf16.msra.mxu0 %v1697
    %2473 = vmatpush.bf16.msra.mxu0 %v1693
    %2474 = vmatpush.bf16.msra.mxu0 %v1689
    %2475 = vmatpush.bf16.msra.mxu0 %v1685
    %2476 = vmatmul.bf16.gmra.mxu0 %v131
    %v2477 = vpop.f32.mrf.mxu0
    %v2478 = vadd.f32 %v2465, %v2477
    %v2479 = vpop.f32.mrf.mxu0
    %2480 = vdwg.mxu0
    %2481 = vmatpush.bf16.msra.mxu0 %v1745
    %2482 = vmatpush.bf16.msra.mxu0 %v1741
    %2483 = vmatpush.bf16.msra.mxu0 %v1737
    %2484 = vmatpush.bf16.msra.mxu0 %v1733
    %2485 = vmatpush.bf16.msra.mxu0 %v1729
    %2486 = vmatpush.bf16.msra.mxu0 %v1725
    %2487 = vmatpush.bf16.msra.mxu0 %v1721
    %2488 = vmatpush.bf16.msra.mxu0 %v1717
    %2489 = vmatmul.bf16.gmra.mxu0 %v132
    %v2490 = vpop.f32.mrf.mxu0
    %v2491 = vadd.f32 %v2478, %v2490
    %v2492 = vpop.f32.mrf.mxu0
    %2493 = vdwg.mxu0
    %2494 = vmatpush.bf16.msra.mxu0 %v1777
    %2495 = vmatpush.bf16.msra.mxu0 %v1773
    %2496 = vmatpush.bf16.msra.mxu0 %v1769
    %2497 = vmatpush.bf16.msra.mxu0 %v1765
    %2498 = vmatpush.bf16.msra.mxu0 %v1761
    %2499 = vmatpush.bf16.msra.mxu0 %v1757
    %2500 = vmatpush.bf16.msra.mxu0 %v1753
    %2501 = vmatpush.bf16.msra.mxu0 %v1749
    %2502 = vmatmul.bf16.gmra.mxu0 %v133
    %v2503 = vpop.f32.mrf.mxu0
    %v2504 = vadd.f32 %v2491, %v2503
    %v2505 = vpop.f32.mrf.mxu0
    %2506 = vdwg.mxu0
    %2507 = vmatpush.bf16.msra.mxu0 %v1809
    %2508 = vmatpush.bf16.msra.mxu0 %v1805
    %2509 = vmatpush.bf16.msra.mxu0 %v1801
    %2510 = vmatpush.bf16.msra.mxu0 %v1797
    %2511 = vmatpush.bf16.msra.mxu0 %v1793
    %2512 = vmatpush.bf16.msra.mxu0 %v1789
    %2513 = vmatpush.bf16.msra.mxu0 %v1785
    %2514 = vmatpush.bf16.msra.mxu0 %v1781
    %2515 = vmatmul.bf16.gmra.mxu0 %v134
    %v2516 = vpop.f32.mrf.mxu0
    %v2517 = vadd.f32 %v2504, %v2516
    %v2518 = vpop.f32.mrf.mxu0
    %2519 = vdwg.mxu0
    %2520 = vmatpush.bf16.msra.mxu0 %v1841
    %2521 = vmatpush.bf16.msra.mxu0 %v1837
    %2522 = vmatpush.bf16.msra.mxu0 %v1833
    %2523 = vmatpush.bf16.msra.mxu0 %v1829
    %2524 = vmatpush.bf16.msra.mxu0 %v1825
    %2525 = vmatpush.bf16.msra.mxu0 %v1821
    %2526 = vmatpush.bf16.msra.mxu0 %v1817
    %2527 = vmatpush.bf16.msra.mxu0 %v1813
    %2528 = vmatmul.bf16.gmra.mxu0 %v135
    %v2529 = vpop.f32.mrf.mxu0
    %v2530 = vadd.f32 %v2517, %v2529
    %v2531 = vpop.f32.mrf.mxu0
    %2532 = vdwg.mxu0
    %2533 = vmatpush.bf16.msra.mxu0 %v1873
    %2534 = vmatpush.bf16.msra.mxu0 %v1869
    %2535 = vmatpush.bf16.msra.mxu0 %v1865
    %2536 = vmatpush.bf16.msra.mxu0 %v1861
    %2537 = vmatpush.bf16.msra.mxu0 %v1857
    %2538 = vmatpush.bf16.msra.mxu0 %v1853
    %2539 = vmatpush.bf16.msra.mxu0 %v1849
    %2540 = vmatpush.bf16.msra.mxu0 %v1845
    %2541 = vmatmul.bf16.gmra.mxu0 %v136
    %v2542 = vpop.f32.mrf.mxu0
    %v2543 = vadd.f32 %v2530, %v2542
    %v2544 = vpop.f32.mrf.mxu0
    %2545 = vdwg.mxu0
    %2546 = vmatpush.bf16.msra.mxu0 %v2265
    %2547 = vmatpush.bf16.msra.mxu0 %v1901
    %2548 = vmatpush.bf16.msra.mxu0 %v1897
    %2549 = vmatpush.bf16.msra.mxu0 %v1893
    %2550 = vmatpush.bf16.msra.mxu0 %v1889
    %2551 = vmatpush.bf16.msra.mxu0 %v1885
    %2552 = vmatpush.bf16.msra.mxu0 %v1881
    %2553 = vmatpush.bf16.msra.mxu0 %v1877
    %2554 = vmatmul.bf16.gmra.mxu0 %v2258
    %v2555 = vpop.f32.mrf.mxu0
    %v2556 = vadd.f32 %v2543, %v2555
    %v2557 = vpop.f32.mrf.mxu0
    %2558 = vdwg.mxu0
    %2559 = vmatpush.bf16.msra.mxu0 %v1586
    %2560 = vmatpush.bf16.msra.mxu0 %v1582
    %2561 = vmatpush.bf16.msra.mxu0 %v1578
    %2562 = vmatpush.bf16.msra.mxu0 %v1574
    %2563 = vmatpush.bf16.msra.mxu0 %v1570
    %2564 = vmatpush.bf16.msra.mxu0 %v1566
    %2565 = vmatpush.bf16.msra.mxu0 %v1562
    %2566 = vmatpush.bf16.msra.mxu0 %v1558
    %2567 = vmatmul.bf16.gmra.mxu0 %v127
    %v2568 = vpop.f32.mrf.mxu0
    %v2569 = vadd.f32 %v494, %v2568
    %v2570 = vpop.f32.mrf.mxu0
    %2571 = vdwg.mxu0
    %2572 = vmatpush.bf16.msra.mxu0 %v1618
    %2573 = vmatpush.bf16.msra.mxu0 %v1614
    %2574 = vmatpush.bf16.msra.mxu0 %v1610
    %2575 = vmatpush.bf16.msra.mxu0 %v1606
    %2576 = vmatpush.bf16.msra.mxu0 %v1602
    %2577 = vmatpush.bf16.msra.mxu0 %v1598
    %2578 = vmatpush.bf16.msra.mxu0 %v1594
    %2579 = vmatpush.bf16.msra.mxu0 %v1590
    %2580 = vmatmul.bf16.gmra.mxu0 %v128
    %v2581 = vpop.f32.mrf.mxu0
    %v2582 = vadd.f32 %v2569, %v2581
    %v2583 = vpop.f32.mrf.mxu0
    %2584 = vdwg.mxu0
    %2585 = vmatpush.bf16.msra.mxu0 %v1650
    %2586 = vmatpush.bf16.msra.mxu0 %v1646
    %2587 = vmatpush.bf16.msra.mxu0 %v1642
    %2588 = vmatpush.bf16.msra.mxu0 %v1638
    %2589 = vmatpush.bf16.msra.mxu0 %v1634
    %2590 = vmatpush.bf16.msra.mxu0 %v1630
    %2591 = vmatpush.bf16.msra.mxu0 %v1626
    %2592 = vmatpush.bf16.msra.mxu0 %v1622
    %2593 = vmatmul.bf16.gmra.mxu0 %v129
    %v2594 = vpop.f32.mrf.mxu0
    %v2595 = vadd.f32 %v2582, %v2594
    %v2596 = vpop.f32.mrf.mxu0
    %2597 = vdwg.mxu0
    %2598 = vmatpush.bf16.msra.mxu0 %v1682
    %2599 = vmatpush.bf16.msra.mxu0 %v1678
    %2600 = vmatpush.bf16.msra.mxu0 %v1674
    %2601 = vmatpush.bf16.msra.mxu0 %v1670
    %2602 = vmatpush.bf16.msra.mxu0 %v1666
    %2603 = vmatpush.bf16.msra.mxu0 %v1662
    %2604 = vmatpush.bf16.msra.mxu0 %v1658
    %2605 = vmatpush.bf16.msra.mxu0 %v1654
    %2606 = vmatmul.bf16.gmra.mxu0 %v130
    %v2607 = vpop.f32.mrf.mxu0
    %v2608 = vadd.f32 %v2595, %v2607
    %v2609 = vpop.f32.mrf.mxu0
    %2610 = vdwg.mxu0
    %2611 = vmatpush.bf16.msra.mxu0 %v1714
    %2612 = vmatpush.bf16.msra.mxu0 %v1710
    %2613 = vmatpush.bf16.msra.mxu0 %v1706
    %2614 = vmatpush.bf16.msra.mxu0 %v1702
    %2615 = vmatpush.bf16.msra.mxu0 %v1698
    %2616 = vmatpush.bf16.msra.mxu0 %v1694
    %2617 = vmatpush.bf16.msra.mxu0 %v1690
    %2618 = vmatpush.bf16.msra.mxu0 %v1686
    %2619 = vmatmul.bf16.gmra.mxu0 %v131
    %v2620 = vpop.f32.mrf.mxu0
    %v2621 = vadd.f32 %v2608, %v2620
    %v2622 = vpop.f32.mrf.mxu0
    %2623 = vdwg.mxu0
    %2624 = vmatpush.bf16.msra.mxu0 %v1746
    %2625 = vmatpush.bf16.msra.mxu0 %v1742
    %2626 = vmatpush.bf16.msra.mxu0 %v1738
    %2627 = vmatpush.bf16.msra.mxu0 %v1734
    %2628 = vmatpush.bf16.msra.mxu0 %v1730
    %2629 = vmatpush.bf16.msra.mxu0 %v1726
    %2630 = vmatpush.bf16.msra.mxu0 %v1722
    %2631 = vmatpush.bf16.msra.mxu0 %v1718
    %2632 = vmatmul.bf16.gmra.mxu0 %v132
    %v2633 = vpop.f32.mrf.mxu0
    %v2634 = vadd.f32 %v2621, %v2633
    %v2635 = vpop.f32.mrf.mxu0
    %2636 = vdwg.mxu0
    %2637 = vmatpush.bf16.msra.mxu0 %v1778
    %2638 = vmatpush.bf16.msra.mxu0 %v1774
    %2639 = vmatpush.bf16.msra.mxu0 %v1770
    %2640 = vmatpush.bf16.msra.mxu0 %v1766
    %2641 = vmatpush.bf16.msra.mxu0 %v1762
    %2642 = vmatpush.bf16.msra.mxu0 %v1758
    %2643 = vmatpush.bf16.msra.mxu0 %v1754
    %2644 = vmatpush.bf16.msra.mxu0 %v1750
    %2645 = vmatmul.bf16.gmra.mxu0 %v133
    %v2646 = vpop.f32.mrf.mxu0
    %v2647 = vadd.f32 %v2634, %v2646
    %v2648 = vpop.f32.mrf.mxu0
    %2649 = vdwg.mxu0
    %2650 = vmatpush.bf16.msra.mxu0 %v1810
    %2651 = vmatpush.bf16.msra.mxu0 %v1806
    %2652 = vmatpush.bf16.msra.mxu0 %v1802
    %2653 = vmatpush.bf16.msra.mxu0 %v1798
    %2654 = vmatpush.bf16.msra.mxu0 %v1794
    %2655 = vmatpush.bf16.msra.mxu0 %v1790
    %2656 = vmatpush.bf16.msra.mxu0 %v1786
    %2657 = vmatpush.bf16.msra.mxu0 %v1782
    %2658 = vmatmul.bf16.gmra.mxu0 %v134
    %v2659 = vpop.f32.mrf.mxu0
    %v2660 = vadd.f32 %v2647, %v2659
    %v2661 = vpop.f32.mrf.mxu0
    %2662 = vdwg.mxu0
    %2663 = vmatpush.bf16.msra.mxu0 %v1842
    %2664 = vmatpush.bf16.msra.mxu0 %v1838
    %2665 = vmatpush.bf16.msra.mxu0 %v1834
    %2666 = vmatpush.bf16.msra.mxu0 %v1830
    %2667 = vmatpush.bf16.msra.mxu0 %v1826
    %2668 = vmatpush.bf16.msra.mxu0 %v1822
    %2669 = vmatpush.bf16.msra.mxu0 %v1818
    %2670 = vmatpush.bf16.msra.mxu0 %v1814
    %2671 = vmatmul.bf16.gmra.mxu0 %v135
    %v2672 = vpop.f32.mrf.mxu0
    %v2673 = vadd.f32 %v2660, %v2672
    %v2674 = vpop.f32.mrf.mxu0
    %2675 = vdwg.mxu0
    %2676 = vmatpush.bf16.msra.mxu0 %v1874
    %2677 = vmatpush.bf16.msra.mxu0 %v1870
    %2678 = vmatpush.bf16.msra.mxu0 %v1866
    %2679 = vmatpush.bf16.msra.mxu0 %v1862
    %2680 = vmatpush.bf16.msra.mxu0 %v1858
    %2681 = vmatpush.bf16.msra.mxu0 %v1854
    %2682 = vmatpush.bf16.msra.mxu0 %v1850
    %2683 = vmatpush.bf16.msra.mxu0 %v1846
    %2684 = vmatmul.bf16.gmra.mxu0 %v136
    %v2685 = vpop.f32.mrf.mxu0
    %v2686 = vadd.f32 %v2673, %v2685
    %v2687 = vpop.f32.mrf.mxu0
    %2688 = vdwg.mxu0
    %2689 = vmatpush.bf16.msra.mxu0 %v2268
    %2690 = vmatpush.bf16.msra.mxu0 %v1902
    %2691 = vmatpush.bf16.msra.mxu0 %v1898
    %2692 = vmatpush.bf16.msra.mxu0 %v1894
    %2693 = vmatpush.bf16.msra.mxu0 %v1890
    %2694 = vmatpush.bf16.msra.mxu0 %v1886
    %2695 = vmatpush.bf16.msra.mxu0 %v1882
    %2696 = vmatpush.bf16.msra.mxu0 %v1878
    %2697 = vmatmul.bf16.gmra.mxu0 %v2258
    %v2698 = vpop.f32.mrf.mxu0
    %v2699 = vadd.f32 %v2686, %v2698
    %v2700 = vpop.f32.mrf.mxu0
    %2701 = vdwg.mxu0
    %2702 = vmatpush.bf16.msra.mxu0 %v1587
    %2703 = vmatpush.bf16.msra.mxu0 %v1583
    %2704 = vmatpush.bf16.msra.mxu0 %v1579
    %2705 = vmatpush.bf16.msra.mxu0 %v1575
    %2706 = vmatpush.bf16.msra.mxu0 %v1571
    %2707 = vmatpush.bf16.msra.mxu0 %v1567
    %2708 = vmatpush.bf16.msra.mxu0 %v1563
    %2709 = vmatpush.bf16.msra.mxu0 %v1559
    %2710 = vmatmul.bf16.gmra.mxu0 %v127
    %v2711 = vpop.f32.mrf.mxu0
    %v2712 = vadd.f32 %v495, %v2711
    %v2713 = vpop.f32.mrf.mxu0
    %2714 = vdwg.mxu0
    %2715 = vmatpush.bf16.msra.mxu0 %v1619
    %2716 = vmatpush.bf16.msra.mxu0 %v1615
    %2717 = vmatpush.bf16.msra.mxu0 %v1611
    %2718 = vmatpush.bf16.msra.mxu0 %v1607
    %2719 = vmatpush.bf16.msra.mxu0 %v1603
    %2720 = vmatpush.bf16.msra.mxu0 %v1599
    %2721 = vmatpush.bf16.msra.mxu0 %v1595
    %2722 = vmatpush.bf16.msra.mxu0 %v1591
    %2723 = vmatmul.bf16.gmra.mxu0 %v128
    %v2724 = vpop.f32.mrf.mxu0
    %v2725 = vadd.f32 %v2712, %v2724
    %v2726 = vpop.f32.mrf.mxu0
    %2727 = vdwg.mxu0
    %2728 = vmatpush.bf16.msra.mxu0 %v1651
    %2729 = vmatpush.bf16.msra.mxu0 %v1647
    %2730 = vmatpush.bf16.msra.mxu0 %v1643
    %2731 = vmatpush.bf16.msra.mxu0 %v1639
    %2732 = vmatpush.bf16.msra.mxu0 %v1635
    %2733 = vmatpush.bf16.msra.mxu0 %v1631
    %2734 = vmatpush.bf16.msra.mxu0 %v1627
    %2735 = vmatpush.bf16.msra.mxu0 %v1623
    %2736 = vmatmul.bf16.gmra.mxu0 %v129
    %v2737 = vpop.f32.mrf.mxu0
    %v2738 = vadd.f32 %v2725, %v2737
    %v2739 = vpop.f32.mrf.mxu0
    %2740 = vdwg.mxu0
    %2741 = vmatpush.bf16.msra.mxu0 %v1683
    %2742 = vmatpush.bf16.msra.mxu0 %v1679
    %2743 = vmatpush.bf16.msra.mxu0 %v1675
    %2744 = vmatpush.bf16.msra.mxu0 %v1671
    %2745 = vmatpush.bf16.msra.mxu0 %v1667
    %2746 = vmatpush.bf16.msra.mxu0 %v1663
    %2747 = vmatpush.bf16.msra.mxu0 %v1659
    %2748 = vmatpush.bf16.msra.mxu0 %v1655
    %2749 = vmatmul.bf16.gmra.mxu0 %v130
    %v2750 = vpop.f32.mrf.mxu0
    %v2751 = vadd.f32 %v2738, %v2750
    %v2752 = vpop.f32.mrf.mxu0
    %2753 = vdwg.mxu0
    %2754 = vmatpush.bf16.msra.mxu0 %v1715
    %2755 = vmatpush.bf16.msra.mxu0 %v1711
    %2756 = vmatpush.bf16.msra.mxu0 %v1707
    %2757 = vmatpush.bf16.msra.mxu0 %v1703
    %2758 = vmatpush.bf16.msra.mxu0 %v1699
    %2759 = vmatpush.bf16.msra.mxu0 %v1695
    %2760 = vmatpush.bf16.msra.mxu0 %v1691
    %2761 = vmatpush.bf16.msra.mxu0 %v1687
    %2762 = vmatmul.bf16.gmra.mxu0 %v131
    %v2763 = vpop.f32.mrf.mxu0
    %v2764 = vadd.f32 %v2751, %v2763
    %v2765 = vpop.f32.mrf.mxu0
    %2766 = vdwg.mxu0
    %2767 = vmatpush.bf16.msra.mxu0 %v1747
    %2768 = vmatpush.bf16.msra.mxu0 %v1743
    %2769 = vmatpush.bf16.msra.mxu0 %v1739
    %2770 = vmatpush.bf16.msra.mxu0 %v1735
    %2771 = vmatpush.bf16.msra.mxu0 %v1731
    %2772 = vmatpush.bf16.msra.mxu0 %v1727
    %2773 = vmatpush.bf16.msra.mxu0 %v1723
    %2774 = vmatpush.bf16.msra.mxu0 %v1719
    %2775 = vmatmul.bf16.gmra.mxu0 %v132
    %v2776 = vpop.f32.mrf.mxu0
    %v2777 = vadd.f32 %v2764, %v2776
    %v2778 = vpop.f32.mrf.mxu0
    %2779 = vdwg.mxu0
    %2780 = vmatpush.bf16.msra.mxu0 %v1779
    %2781 = vmatpush.bf16.msra.mxu0 %v1775
    %2782 = vmatpush.bf16.msra.mxu0 %v1771
    %2783 = vmatpush.bf16.msra.mxu0 %v1767
    %2784 = vmatpush.bf16.msra.mxu0 %v1763
    %2785 = vmatpush.bf16.msra.mxu0 %v1759
    %2786 = vmatpush.bf16.msra.mxu0 %v1755
    %2787 = vmatpush.bf16.msra.mxu0 %v1751
    %2788 = vmatmul.bf16.gmra.mxu0 %v133
    %v2789 = vpop.f32.mrf.mxu0
    %v2790 = vadd.f32 %v2777, %v2789
    %v2791 = vpop.f32.mrf.mxu0
    %2792 = vdwg.mxu0
    %2793 = vmatpush.bf16.msra.mxu0 %v1811
    %2794 = vmatpush.bf16.msra.mxu0 %v1807
    %2795 = vmatpush.bf16.msra.mxu0 %v1803
    %2796 = vmatpush.bf16.msra.mxu0 %v1799
    %2797 = vmatpush.bf16.msra.mxu0 %v1795
    %2798 = vmatpush.bf16.msra.mxu0 %v1791
    %2799 = vmatpush.bf16.msra.mxu0 %v1787
    %2800 = vmatpush.bf16.msra.mxu0 %v1783
    %2801 = vmatmul.bf16.gmra.mxu0 %v134
    %v2802 = vpop.f32.mrf.mxu0
    %v2803 = vadd.f32 %v2790, %v2802
    %v2804 = vpop.f32.mrf.mxu0
    %2805 = vdwg.mxu0
    %2806 = vmatpush.bf16.msra.mxu0 %v1843
    %2807 = vmatpush.bf16.msra.mxu0 %v1839
    %2808 = vmatpush.bf16.msra.mxu0 %v1835
    %2809 = vmatpush.bf16.msra.mxu0 %v1831
    %2810 = vmatpush.bf16.msra.mxu0 %v1827
    %2811 = vmatpush.bf16.msra.mxu0 %v1823
    %2812 = vmatpush.bf16.msra.mxu0 %v1819
    %2813 = vmatpush.bf16.msra.mxu0 %v1815
    %2814 = vmatmul.bf16.gmra.mxu0 %v135
    %v2815 = vpop.f32.mrf.mxu0
    %v2816 = vadd.f32 %v2803, %v2815
    %v2817 = vpop.f32.mrf.mxu0
    %2818 = vdwg.mxu0
    %2819 = vmatpush.bf16.msra.mxu0 %v1875
    %2820 = vmatpush.bf16.msra.mxu0 %v1871
    %2821 = vmatpush.bf16.msra.mxu0 %v1867
    %2822 = vmatpush.bf16.msra.mxu0 %v1863
    %2823 = vmatpush.bf16.msra.mxu0 %v1859
    %2824 = vmatpush.bf16.msra.mxu0 %v1855
    %2825 = vmatpush.bf16.msra.mxu0 %v1851
    %2826 = vmatpush.bf16.msra.mxu0 %v1847
    %2827 = vmatmul.bf16.gmra.mxu0 %v136
    %v2828 = vpop.f32.mrf.mxu0
    %v2829 = vadd.f32 %v2816, %v2828
    %v2830 = vpop.f32.mrf.mxu0
    %2831 = vdwg.mxu0
    %2832 = vmatpush.bf16.msra.mxu0 %v2271
    %2833 = vmatpush.bf16.msra.mxu0 %v1903
    %2834 = vmatpush.bf16.msra.mxu0 %v1899
    %2835 = vmatpush.bf16.msra.mxu0 %v1895
    %2836 = vmatpush.bf16.msra.mxu0 %v1891
    %2837 = vmatpush.bf16.msra.mxu0 %v1887
    %2838 = vmatpush.bf16.msra.mxu0 %v1883
    %2839 = vmatpush.bf16.msra.mxu0 %v1879
    %2840 = vmatmul.bf16.gmra.mxu0 %v2258
    %v2841 = vpop.f32.mrf.mxu0
    %v2842 = vadd.f32 %v2829, %v2841
    %v2843 = vpop.f32.mrf.mxu0
    %2844 = vdwg.mxu0
    %v2845 = vmax.f32 %v2413, 0.0
    %v2846 = vmax.f32 %v2556, 0.0
    %v2847 = vmax.f32 %v2699, 0.0
    %v2848 = vmax.f32 %v2842, 0.0
    %v2849 = vpack.c.bf16 %v2845, %v2845
    %v2850 = vpack.c.bf16 %v2846, %v2846
    %v2851 = vpack.c.bf16 %v2847, %v2847
    %v2852 = vpack.c.bf16 %v2848, %v2848
    %v2853 = vld [vmem:[#allocation7] sm:$0xf]
    %v2854 = vld [vmem:[#allocation7 + $0x4] sm:$0xf]
    %v2855 = vld [vmem:[#allocation7 + $0x8] sm:$0xf]
    %v2856 = vld [vmem:[#allocation7 + $0xc] sm:$0xf]
    %v2857 = vld [vmem:[#allocation7 + $0x10] sm:$0xf]
    %v2858 = vld [vmem:[#allocation7 + $0x14] sm:$0xf]
    %v2859 = vld [vmem:[#allocation7 + $0x18] sm:$0xf]
    %v2860 = vld [vmem:[#allocation7 + $0x1c] sm:$0xf]
    %v2861 = vld [vmem:[#allocation7 + $0x20] sm:$0xf]
    %v2862 = vld [vmem:[#allocation7 + $0x24] sm:$0xf]
    %v2863 = vld [vmem:[#allocation7 + $0x28] sm:$0xf]
    %v2864 = vld [vmem:[#allocation7 + $0x2c] sm:$0xf]
    %v2865 = vld [vmem:[#allocation7 + $0x30] sm:$0xf]
    %v2866 = vld [vmem:[#allocation7 + $0x34] sm:$0xf]
    %v2867 = vld [vmem:[#allocation7 + $0x38] sm:$0xf]
    %v2868 = vld [vmem:[#allocation7 + $0x3c] sm:$0xf]
    %v2869 = vld [vmem:[#allocation7 + $0x40] sm:$0xf]
    %v2870 = vld [vmem:[#allocation7 + $0x44] sm:$0xf]
    %v2871 = vld [vmem:[#allocation7 + $0x48] sm:$0xf]
    %v2872 = vld [vmem:[#allocation7 + $0x4c] sm:$0xf]
    %v2873 = vld [vmem:[#allocation7 + $0x50] sm:$0xf]
    %v2874 = vld [vmem:[#allocation7 + $0x54] sm:$0xf]
    %v2875 = vld [vmem:[#allocation7 + $0x58] sm:$0xf]
    %v2876 = vld [vmem:[#allocation7 + $0x5c] sm:$0xf]
    %v2877 = vld [vmem:[#allocation7 + $0x60] sm:$0xf]
    %v2878 = vld [vmem:[#allocation7 + $0x64] sm:$0xf]
    %v2879 = vld [vmem:[#allocation7 + $0x68] sm:$0xf]
    %v2880 = vld [vmem:[#allocation7 + $0x6c] sm:$0xf]
    %v2881 = vld [vmem:[#allocation7 + $0x70] sm:$0xf]
    %v2882 = vld [vmem:[#allocation7 + $0x74] sm:$0xf]
    %v2883 = vld [vmem:[#allocation7 + $0x78] sm:$0xf]
    %v2884 = vld [vmem:[#allocation7 + $0x7c] sm:$0xf]
    %v2885 = vld [vmem:[#allocation7 + $0x80] sm:$0xf]
    %v2886 = vld [vmem:[#allocation7 + $0x84] sm:$0xf]
    %v2887 = vld [vmem:[#allocation7 + $0x88] sm:$0xf]
    %v2888 = vld [vmem:[#allocation7 + $0x8c] sm:$0xf]
    %v2889 = vld [vmem:[#allocation7 + $0x90] sm:$0xf]
    %v2890 = vld [vmem:[#allocation7 + $0x94] sm:$0xf]
    %v2891 = vld [vmem:[#allocation7 + $0x98] sm:$0xf]
    %v2892 = vld [vmem:[#allocation7 + $0x9c] sm:$0xf]
    %v2893 = vld [vmem:[#allocation7 + $0xa0] sm:$0xf]
    %v2894 = vld [vmem:[#allocation7 + $0xa4] sm:$0xf]
    %v2895 = vld [vmem:[#allocation7 + $0xa8] sm:$0xf]
    %v2896 = vld [vmem:[#allocation7 + $0xac] sm:$0xf]
    %v2897 = vld [vmem:[#allocation7 + $0xb0] sm:$0xf]
    %v2898 = vld [vmem:[#allocation7 + $0xb4] sm:$0xf]
    %v2899 = vld [vmem:[#allocation7 + $0xb8] sm:$0xf]
    %v2900 = vld [vmem:[#allocation7 + $0xbc] sm:$0xf]
    %v2901 = vld [vmem:[#allocation7 + $0xc0] sm:$0xf]
    %v2902 = vld [vmem:[#allocation7 + $0xc4] sm:$0xf]
    %v2903 = vld [vmem:[#allocation7 + $0xc8] sm:$0xf]
    %v2904 = vld [vmem:[#allocation7 + $0xcc] sm:$0xf]
    %v2905 = vld [vmem:[#allocation7 + $0xd0] sm:$0xf]
    %v2906 = vld [vmem:[#allocation7 + $0xd4] sm:$0xf]
    %v2907 = vld [vmem:[#allocation7 + $0xd8] sm:$0xf]
    %v2908 = vld [vmem:[#allocation7 + $0xdc] sm:$0xf]
    %v2909 = vld [vmem:[#allocation7 + $0xe0] sm:$0xf]
    %v2910 = vld [vmem:[#allocation7 + $0xe4] sm:$0xf]
    %v2911 = vld [vmem:[#allocation7 + $0xe8] sm:$0xf]
    %v2912 = vld [vmem:[#allocation7 + $0xec] sm:$0xf]
    %v2913 = vld [vmem:[#allocation7 + $0xf0] sm:$0xf]
    %v2914 = vld [vmem:[#allocation7 + $0xf4] sm:$0xf]
    %v2915 = vld [vmem:[#allocation7 + $0xf8] sm:$0xf]
    %v2916 = vld [vmem:[#allocation7 + $0xfc] sm:$0xf]
    %v2917 = vld [vmem:[#allocation10 + $0x1] sm:$0x1]
    %v2918 = vperm.slane %v2917, 0
    %v2983 = vunpack.c.l.b16 %v2853
    %v2984 = vunpack.c.l.b16 %v2854
    %v2985 = vunpack.c.l.b16 %v2855
    %v2986 = vunpack.c.l.b16 %v2856
    %v2987 = vunpack.c.l.b16 %v2857
    %v2988 = vunpack.c.l.b16 %v2858
    %v2989 = vunpack.c.l.b16 %v2859
    %v2990 = vunpack.c.l.b16 %v2860
    %v2991 = vunpack.c.l.b16 %v2861
    %v2992 = vunpack.c.l.b16 %v2862
    %v2993 = vunpack.c.l.b16 %v2863
    %v2994 = vunpack.c.l.b16 %v2864
    %v2995 = vunpack.c.l.b16 %v2865
    %v2996 = vunpack.c.l.b16 %v2866
    %v2997 = vunpack.c.l.b16 %v2867
    %v2998 = vunpack.c.l.b16 %v2868
    %v2999 = vunpack.c.l.b16 %v2869
    %v3000 = vunpack.c.l.b16 %v2870
    %v3001 = vunpack.c.l.b16 %v2871
    %v3002 = vunpack.c.l.b16 %v2872
    %v3003 = vunpack.c.l.b16 %v2873
    %v3004 = vunpack.c.l.b16 %v2874
    %v3005 = vunpack.c.l.b16 %v2875
    %v3006 = vunpack.c.l.b16 %v2876
    %v3007 = vunpack.c.l.b16 %v2877
    %v3008 = vunpack.c.l.b16 %v2878
    %v3009 = vunpack.c.l.b16 %v2879
    %v3010 = vunpack.c.l.b16 %v2880
    %v3011 = vunpack.c.l.b16 %v2881
    %v3012 = vunpack.c.l.b16 %v2882
    %v3013 = vunpack.c.l.b16 %v2883
    %v3014 = vunpack.c.l.b16 %v2884
    %v3015 = vunpack.c.l.b16 %v2885
    %v3016 = vunpack.c.l.b16 %v2886
    %v3017 = vunpack.c.l.b16 %v2887
    %v3018 = vunpack.c.l.b16 %v2888
    %v3019 = vunpack.c.l.b16 %v2889
    %v3020 = vunpack.c.l.b16 %v2890
    %v3021 = vunpack.c.l.b16 %v2891
    %v3022 = vunpack.c.l.b16 %v2892
    %v3023 = vunpack.c.l.b16 %v2893
    %v3024 = vunpack.c.l.b16 %v2894
    %v3025 = vunpack.c.l.b16 %v2895
    %v3026 = vunpack.c.l.b16 %v2896
    %v3027 = vunpack.c.l.b16 %v2897
    %v3028 = vunpack.c.l.b16 %v2898
    %v3029 = vunpack.c.l.b16 %v2899
    %v3030 = vunpack.c.l.b16 %v2900
    %v3031 = vunpack.c.l.b16 %v2901
    %v3032 = vunpack.c.l.b16 %v2902
    %v3033 = vunpack.c.l.b16 %v2903
    %v3034 = vunpack.c.l.b16 %v2904
    %v3035 = vunpack.c.l.b16 %v2905
    %v3036 = vunpack.c.l.b16 %v2906
    %v3037 = vunpack.c.l.b16 %v2907
    %v3038 = vunpack.c.l.b16 %v2908
    %v3039 = vunpack.c.l.b16 %v2909
    %v3040 = vunpack.c.l.b16 %v2910
    %v3041 = vunpack.c.l.b16 %v2911
    %v3042 = vunpack.c.l.b16 %v2912
    %v3043 = vunpack.c.l.b16 %v2913
    %v3044 = vunpack.c.l.b16 %v2914
    %v3045 = vunpack.c.l.b16 %v2915
    %v3046 = vunpack.c.l.b16 %v2916
    %v3047 = vpack.c.b16 %v2984, %v2983
    %v3048 = vpack.c.b16 %v2986, %v2985
    %v3049 = vpack.c.b16 %v2988, %v2987
    %v3050 = vpack.c.b16 %v2990, %v2989
    %v3051 = vpack.c.b16 %v2992, %v2991
    %v3052 = vpack.c.b16 %v2994, %v2993
    %v3053 = vpack.c.b16 %v2996, %v2995
    %v3054 = vpack.c.b16 %v2998, %v2997
    %v3055 = vpack.c.b16 %v3000, %v2999
    %v3056 = vpack.c.b16 %v3002, %v3001
    %v3057 = vpack.c.b16 %v3004, %v3003
    %v3058 = vpack.c.b16 %v3006, %v3005
    %v3059 = vpack.c.b16 %v3008, %v3007
    %v3060 = vpack.c.b16 %v3010, %v3009
    %v3061 = vpack.c.b16 %v3012, %v3011
    %v3062 = vpack.c.b16 %v3014, %v3013
    %v3063 = vpack.c.b16 %v3016, %v3015
    %v3064 = vpack.c.b16 %v3018, %v3017
    %v3065 = vpack.c.b16 %v3020, %v3019
    %v3066 = vpack.c.b16 %v3022, %v3021
    %v3067 = vpack.c.b16 %v3024, %v3023
    %v3068 = vpack.c.b16 %v3026, %v3025
    %v3069 = vpack.c.b16 %v3028, %v3027
    %v3070 = vpack.c.b16 %v3030, %v3029
    %v3071 = vpack.c.b16 %v3032, %v3031
    %v3072 = vpack.c.b16 %v3034, %v3033
    %v3073 = vpack.c.b16 %v3036, %v3035
    %v3074 = vpack.c.b16 %v3038, %v3037
    %v3075 = vpack.c.b16 %v3040, %v3039
    %v3076 = vpack.c.b16 %v3042, %v3041
    %v3077 = vpack.c.b16 %v3044, %v3043
    %v3078 = vpack.c.b16 %v3046, %v3045
    %3111 = vmatpush.bf16.msra.mxu0 %v3054
    %3112 = vmatpush.bf16.msra.mxu0 %v3053
    %3113 = vmatpush.bf16.msra.mxu0 %v3052
    %3114 = vmatpush.bf16.msra.mxu0 %v3051
    %3115 = vmatpush.bf16.msra.mxu0 %v3050
    %3116 = vmatpush.bf16.msra.mxu0 %v3049
    %3117 = vmatpush.bf16.msra.mxu0 %v3048
    %3118 = vmatpush.bf16.msra.mxu0 %v3047
    %3119 = vmatmul.bf16.gmra.mxu0 %v2849
    %v3120 = vpop.f32.mrf.mxu0
    %v3121 = vadd.f32 %v2918, %v3120
    %v3122 = vpop.f32.mrf.mxu0
    %3123 = vdwg.mxu0
    %3124 = vmatpush.bf16.msra.mxu0 %v3062
    %3125 = vmatpush.bf16.msra.mxu0 %v3061
    %3126 = vmatpush.bf16.msra.mxu0 %v3060
    %3127 = vmatpush.bf16.msra.mxu0 %v3059
    %3128 = vmatpush.bf16.msra.mxu0 %v3058
    %3129 = vmatpush.bf16.msra.mxu0 %v3057
    %3130 = vmatpush.bf16.msra.mxu0 %v3056
    %3131 = vmatpush.bf16.msra.mxu0 %v3055
    %3132 = vmatmul.bf16.gmra.mxu0 %v2850
    %v3133 = vpop.f32.mrf.mxu0
    %v3134 = vadd.f32 %v3121, %v3133
    %v3135 = vpop.f32.mrf.mxu0
    %3136 = vdwg.mxu0
    %3137 = vmatpush.bf16.msra.mxu0 %v3070
    %3138 = vmatpush.bf16.msra.mxu0 %v3069
    %3139 = vmatpush.bf16.msra.mxu0 %v3068
    %3140 = vmatpush.bf16.msra.mxu0 %v3067
    %3141 = vmatpush.bf16.msra.mxu0 %v3066
    %3142 = vmatpush.bf16.msra.mxu0 %v3065
    %3143 = vmatpush.bf16.msra.mxu0 %v3064
    %3144 = vmatpush.bf16.msra.mxu0 %v3063
    %3145 = vmatmul.bf16.gmra.mxu0 %v2851
    %v3146 = vpop.f32.mrf.mxu0
    %v3147 = vadd.f32 %v3134, %v3146
    %v3148 = vpop.f32.mrf.mxu0
    %3149 = vdwg.mxu0
    %3150 = vmatpush.bf16.msra.mxu0 %v3078
    %3151 = vmatpush.bf16.msra.mxu0 %v3077
    %3152 = vmatpush.bf16.msra.mxu0 %v3076
    %3153 = vmatpush.bf16.msra.mxu0 %v3075
    %3154 = vmatpush.bf16.msra.mxu0 %v3074
    %3155 = vmatpush.bf16.msra.mxu0 %v3073
    %3156 = vmatpush.bf16.msra.mxu0 %v3072
    %3157 = vmatpush.bf16.msra.mxu0 %v3071
    %3158 = vmatmul.bf16.gmra.mxu0 %v2852
    %v3159 = vpop.f32.mrf.mxu0
    %v3160 = vadd.f32 %v3147, %v3159
    %v3161 = vpop.f32.mrf.mxu0
    %3162 = vdwg.mxu0
    %v3163 = vmax.f32 %v3160, 0.0
    %v3164 = vpack.c.bf16 %v3163, %v3163
    %v3165 = vld [vmem:[#allocation8] sm:$0xf]
    %v3166 = vld [vmem:[#allocation8 + $0x4] sm:$0xf]
    %v3167 = vld [vmem:[#allocation8 + $0x8] sm:$0xf]
    %v3168 = vld [vmem:[#allocation8 + $0xc] sm:$0xf]
    %v3169 = vld [vmem:[#allocation8 + $0x10] sm:$0xf]
    %v3170 = vld [vmem:[#allocation8 + $0x14] sm:$0xf]
    %v3171 = vld [vmem:[#allocation8 + $0x18] sm:$0xf]
    %v3172 = vld [vmem:[#allocation8 + $0x1c] sm:$0xf]
    %v3173 = vld [vmem:[#allocation8 + $0x20] sm:$0xf]
    %v3174 = vld [vmem:[#allocation8 + $0x24] sm:$0xf]
    %v3175 = vld [vmem:[#allocation8 + $0x28] sm:$0xf]
    %v3176 = vld [vmem:[#allocation8 + $0x2c] sm:$0xf]
    %v3177 = vld [vmem:[#allocation8 + $0x30] sm:$0xf]
    %v3178 = vld [vmem:[#allocation8 + $0x34] sm:$0xf]
    %v3179 = vld [vmem:[#allocation8 + $0x38] sm:$0xf]
    %v3180 = vld [vmem:[#allocation8 + $0x3c] sm:$0xf]
    %v3181 = vld [vmem:[#allocation10 + $0x2] sm:$0x1]
    %v3182 = vperm.slane %v3181, 0
    %v3199 = vunpack.c.l.b16 %v3165
    %v3200 = vunpack.c.l.b16 %v3166
    %v3201 = vunpack.c.l.b16 %v3167
    %v3202 = vunpack.c.l.b16 %v3168
    %v3203 = vunpack.c.l.b16 %v3169
    %v3204 = vunpack.c.l.b16 %v3170
    %v3205 = vunpack.c.l.b16 %v3171
    %v3206 = vunpack.c.l.b16 %v3172
    %v3207 = vunpack.c.l.b16 %v3173
    %v3208 = vunpack.c.l.b16 %v3174
    %v3209 = vunpack.c.l.b16 %v3175
    %v3210 = vunpack.c.l.b16 %v3176
    %v3211 = vunpack.c.l.b16 %v3177
    %v3212 = vunpack.c.l.b16 %v3178
    %v3213 = vunpack.c.l.b16 %v3179
    %v3214 = vunpack.c.l.b16 %v3180
    %v3215 = vpack.c.b16 %v3200, %v3199
    %v3216 = vpack.c.b16 %v3202, %v3201
    %v3217 = vpack.c.b16 %v3204, %v3203
    %v3218 = vpack.c.b16 %v3206, %v3205
    %v3219 = vpack.c.b16 %v3208, %v3207
    %v3220 = vpack.c.b16 %v3210, %v3209
    %v3221 = vpack.c.b16 %v3212, %v3211
    %v3222 = vpack.c.b16 %v3214, %v3213
    %3231 = vmatpush.bf16.msra.mxu0 %v3222
    %3232 = vmatpush.bf16.msra.mxu0 %v3221
    %3233 = vmatpush.bf16.msra.mxu0 %v3220
    %3234 = vmatpush.bf16.msra.mxu0 %v3219
    %3235 = vmatpush.bf16.msra.mxu0 %v3218
    %3236 = vmatpush.bf16.msra.mxu0 %v3217
    %3237 = vmatpush.bf16.msra.mxu0 %v3216
    %3238 = vmatpush.bf16.msra.mxu0 %v3215
    %3239 = vmatmul.bf16.gmra.mxu0 %v3164
    %v3240 = vpop.f32.mrf.mxu0
    %v3241 = vadd.f32 %v3182, %v3240
    %v3242 = vpop.f32.mrf.mxu0
    %3243 = vdwg.mxu0
    %v3244 = vpack.c.bf16 %v3241, %v3241
    %3245 = vst [vmem:[#allocation11] sm:$0x1] %v3244
    // Predicated region
    $region42: #{tpu_custom_call.1} parent=1 // pred_check
      _
    $region43: #{tpu_custom_call.1} parent=1 // pred_check_branch
      %3247 = sbr.rel (0) target = $region45
    $region44: #{tpu_custom_call.1} parent=1 // pred_region
      %3249 = vsyncadd [#allocation4], 0
      %s3251 = sshll.u32 [#allocation11], 4
      %s3252 = int_to_ptr.vmem [resolvable:$true] %s3251
      %s3253 = sshll.u32 %s5, 4
      %s3254 = int_to_ptr.hbm [resolvable:$true] %s3253
      %3256 = dma.vmem_to_hbm [thread:$0]  %s3252, 16, %s3254, [#allocation4]
    $region45: #{tpu_custom_call.1} parent=1 // pred_fallthru
      _
    // Predicated region
    $region46: #{tpu_custom_call.1} parent=1 // pred_check
      _
    $region47: #{tpu_custom_call.1} parent=1 // pred_check_branch
      %3258 = sbr.rel (0) target = $region49
    $region48: #{tpu_custom_call.1} parent=1 // pred_region
      %3260 = dma.done [#allocation4], 16
    $region49: #{tpu_custom_call.1} parent=1 // pred_fallthru
      _
    %3261 = vsyncpa [#allocation3], 1
    %3262 = vsyncpa [#allocation6], 1
    %3263 = vsyncpa [#allocation9], 1
    %3264 = vsyncpa [#allocation4], 1

</llo_original>
